<compile_context>
chip_gen: v5e
topology: v5e:2x2
jax: 0.10.0
libtpu: 0.0.40
codegen_flags: <defaults>
</compile_context>

<pallas_src>
import functools

import numpy as np
import jax
import jax.numpy as jnp
from jax import lax
from jax.experimental import pallas as pl
from jax.experimental.pallas import tpu as pltpu


# ----------------------- synthetic cfg (mirrors cfg.* in the module) ----------
class CFG:
    # cfg.CNNRNN
    in_channels = 4
    hid_channels = 8
    out_channels = 16
    kernel_size = 4
    stride = 2
    padding = 0            # the length-update formula in forward() assumes padding == 0
    rnn_type = "GRU"
    # cfg.CNNRNN_RNN
    rnn_input_size = 16    # == out_channels
    rnn_hidden_size = 32
    rnn_num_layers = 1
    rnn_dropout = 0.0
    rnn_bidirectional = False
    # cfg.CNNRNN_ATT
    att_in_size = 32       # == rnn_hidden_size (unidirectional GRU)
    att_hidden_size = 16
    att_n_heads = 2
    # cfg.SPEECH
    self_att = True


_VMEM = functools.partial(pl.BlockSpec, memory_space=pltpu.MemorySpace.VMEM)
_LANES = 128


def _bn_train(y, gamma, beta, eps=1e-5):
    """Training-mode BatchNorm1d over rows; centered two-pass stats in f32."""
    mean = jnp.mean(y, axis=0, keepdims=True)
    d = y - mean
    var = jnp.mean(d * d, axis=0, keepdims=True)
    return d * lax.rsqrt(var + eps) * gamma + beta


def _pack_rows(named_arrays):
    """Zero-pad each 2-D (or 1-D) array to 128 lanes and stack along sublanes.

    Returns (packed (R,128) f32 array, {name: (row_offset, rows, cols)}).
    """
    meta, rows, off = {}, [], 0
    for name, a in named_arrays:
        a2 = a if a.ndim == 2 else a.reshape(1, -1)
        r, c = a2.shape
        meta[name] = (off, r, c)
        rows.append(jnp.pad(a2.astype(jnp.float32), ((0, 0), (0, _LANES - c))))
        off += r
    return jnp.concatenate(rows, axis=0), meta


# --------------------------------- parameters ----------------------------------
def init_params(key):
    C = CFG
    k = jax.random.split(key, 12)
    s = 0.1
    # TODO(synk): nn.init.orthogonal for attention weights replaced by deterministic
    # gaussian init (synthetic weights, no checkpoint).
    return dict(
        conv1_w=s * jax.random.normal(k[0], (C.kernel_size * C.in_channels, C.hid_channels), jnp.float32),
        conv1_b=s * jax.random.normal(k[1], (C.hid_channels,), jnp.float32),
        bn1_gamma=jnp.ones((C.hid_channels,), jnp.float32),
        bn1_beta=jnp.zeros((C.hid_channels,), jnp.float32),
        conv2_w=s * jax.random.normal(k[2], (C.kernel_size * C.hid_channels, C.out_channels), jnp.float32),
        conv2_b=s * jax.random.normal(k[3], (C.out_channels,), jnp.float32),
        bn2_gamma=jnp.ones((C.out_channels,), jnp.float32),
        bn2_beta=jnp.zeros((C.out_channels,), jnp.float32),
        gru_wih=s * jax.random.normal(k[4], (C.rnn_input_size, 3 * C.rnn_hidden_size), jnp.float32),
        gru_whh=s * jax.random.normal(k[5], (C.rnn_hidden_size, 3 * C.rnn_hidden_size), jnp.float32),
        gru_bih=s * jax.random.normal(k[6], (3 * C.rnn_hidden_size,), jnp.float32),
        gru_bhh=s * jax.random.normal(k[7], (3 * C.rnn_hidden_size,), jnp.float32),
        att_wh=s * jax.random.normal(k[8], (C.att_n_heads, C.att_in_size, C.att_hidden_size), jnp.float32),
        att_bh=s * jax.random.normal(k[9], (C.att_n_heads, 1, C.att_hidden_size), jnp.float32),
        att_wo=s * jax.random.normal(k[10], (C.att_n_heads, C.att_hidden_size, C.att_in_size), jnp.float32),
        att_bo=s * jax.random.normal(k[11], (C.att_n_heads, 1, C.att_in_size), jnp.float32),
    )


# ---------------------------------- forward ------------------------------------
def cnn_rnn_encoder_forward(params, x, lengths):
    """x: (B, T, Cin) float32; lengths: static tuple of Python ints, sorted descending."""
    C = CFG
    B, T, Cin = x.shape
    K, st = C.kernel_size, C.stride
    T1 = (T - K) // st + 1
    T2 = (T1 - K) // st + 1
    assert all(lengths[i] >= lengths[i + 1] for i in range(len(lengths) - 1)), \
        "pack_padded_sequence requires sorted (descending) lengths"
    # replicate the module's Python length arithmetic exactly
    l = [int((y - (K - st)) / st) for y in lengths]
    l = [int((y - (K - st)) / st) for y in l]
    t_pad = max(l)                                  # pad_packed_sequence pads to longest
    H = C.rnn_hidden_size
    A = C.att_in_size                               # == H for attention over GRU output
    heads = C.att_n_heads
    TB = t_pad * B
    out_dim = heads * A if C.self_att else H
    out_pad = ((out_dim + _LANES - 1) // _LANES) * _LANES

    # number of still-active sequences at each GRU step (prefix, since lengths sorted)
    nvalid = [sum(1 for lb in l if lb > t) for t in range(t_pad)]

    # --- conv1 host-side im2col, rows reordered per batch as (phase = p % stride, j) so that
    #     conv2's strided gather becomes contiguous slices inside the kernel ---
    n_phase = [len(range(q, T1, st)) for q in range(st)]
    phase_off = [0] * st
    for q in range(1, st):
        phase_off[q] = phase_off[q - 1] + n_phase[q - 1]
    perm_t = np.concatenate([np.arange(q, T1, st) for q in range(st)])       # natural p per row
    cols = [x[:, k:k + (T1 - 1) * st + 1:st, :] for k in range(K)]           # (B, T1, Cin) each
    xcol1 = jnp.concatenate(cols, axis=-1)[:, perm_t, :].reshape(B * T1, K * Cin)

    # softmax segment matrix (time-major rows t*B + b); includes padded steps, as pad_packed does
    Mnp = np.zeros((B, TB), np.float32)
    for b in range(B):
        Mnp[b, b::B] = 1.0

    # attention heads flattened: one GEMM for hidden, block-diagonal GEMM for scores
    wh_cat = jnp.concatenate([params["att_wh"][i] for i in range(heads)], axis=1)   # (A, heads*Hh)
    bh_cat = jnp.concatenate([params["att_bh"][i] for i in range(heads)], axis=1)   # (1, heads*Hh)
    wo_blk = jax.scipy.linalg.block_diag(*[params["att_wo"][i] for i in range(heads)])  # (heads*Hh, heads*A)
    bo_cat = jnp.concatenate([params["att_bo"][i] for i in range(heads)], axis=1)   # (1, heads*A)

    # --- operand packing: one bf16 weight slab + one f32 slab (Whh / biases / segment matrix) ---
    wbf, bf_meta = _pack_rows([
        ("c1w", params["conv1_w"]), ("c2w", params["conv2_w"]),
        ("wih", params["gru_wih"]), ("wh", wh_cat), ("wo", wo_blk)])
    wbf = wbf.astype(jnp.bfloat16)
    wf32, f32_meta = _pack_rows([
        ("whh", params["gru_whh"]), ("M", jnp.asarray(Mnp)),
        ("c1b", params["conv1_b"]), ("g1", params["bn1_gamma"]), ("b1", params["bn1_beta"]),
        ("c2b", params["conv2_b"]), ("g2", params["bn2_gamma"]), ("b2", params["bn2_beta"]),
        ("bih", params["gru_bih"]), ("bhh", params["gru_bhh"]),
        ("bh", bh_cat), ("bo", bo_cat)])

    # ------------------------------ fused encoder kernel ------------------------------
    def kernel(xcol1_ref, wbf_ref, wf32_ref, o_ref):
        def wb(name):
            o, r, c = bf_meta[name]
            return wbf_ref[o:o + r, :c]

        def wf(name):
            o, r, c = f32_meta[name]
            return wf32_ref[o:o + r, :c]

        # ---- Conv1 (im2col GEMM, bf16 operands / f32 accumulate) + BatchNorm1d ----
        y1 = jnp.dot(xcol1_ref[...].astype(jnp.bfloat16), wb("c1w"),
                     preferred_element_type=jnp.float32) + wf("c1b")
        y1 = _bn_train(y1, wf("g1"), wf("b1"))               # (B*T1, Ch), rows (b, phase, j)

        # ---- Conv2: strided im2col == contiguous slices of the phase-ordered y1 ----
        xcol2_rows = []
        for b in range(B):
            base = b * T1
            pieces = []
            for k in range(K):
                q, shift = k % st, k // st
                s0 = base + phase_off[q] + shift
                pieces.append(y1[s0:s0 + T2, :])             # (T2, Ch), contiguous slice
            xcol2_rows.append(jnp.concatenate(pieces, axis=1))
        xcol2 = jnp.concatenate(xcol2_rows, axis=0)          # (B*T2, K*Ch), batch-major (b, t)
        y2 = jnp.dot(xcol2.astype(jnp.bfloat16), wb("c2w"),
                     preferred_element_type=jnp.float32) + wf("c2b")
        y2 = _bn_train(y2, wf("g2"), wf("b2"))               # (B*T2, Cout)

        # ---- GRU: input projection hoisted to one GEMM; recurrence stays in vregs (f32) ----
        gx = jnp.dot(y2.astype(jnp.bfloat16), wb("wih"),
                     preferred_element_type=jnp.float32) + wf("bih")          # (B*T2, 3H)
        gxts = [jnp.concatenate([gx[b * T2 + t:b * T2 + t + 1, :] for b in range(B)], axis=0)
                for t in range(t_pad)]                       # per-step (B, 3H), off the serial chain
        whh = wf("whh")
        bhh = wf("bhh")
        # TODO(synk): on v5e/v6e, pltpu.matmul_push_rhs could hold whh staged on the MXU across
        # the unrolled steps; kept as jnp.dot for portability.
        h = jnp.zeros((B, H), jnp.float32)
        outs = []
        for t in range(t_pad):                               # static trip count -> full unroll
            gh = jnp.dot(h, whh, preferred_element_type=jnp.float32) + bhh
            gxt = gxts[t]
            r = jax.nn.sigmoid(gxt[:, :H] + gh[:, :H])
            z = jax.nn.sigmoid(gxt[:, H:2 * H] + gh[:, H:2 * H])
            n = jnp.tanh(gxt[:, 2 * H:] + r * gh[:, 2 * H:])
            h = (1.0 - z) * n + z * h
            if nvalid[t] == B:
                outs.append(h)
            else:
                # pad_packed zero-fill for finished sequences; carry h stays unmasked
                # (hidden state past a length never affects outputs at valid steps).
                m = (lax.broadcasted_iota(jnp.int32, (B, 1), 0) < nvalid[t]).astype(jnp.float32)
                outs.append(h * m)
        xr = jnp.concatenate(outs, axis=0)                   # (t_pad*B, H), time-major, vreg-resident

        Mseg = wf("M")                                       # (B, t_pad*B) one-hot segment matrix
        if C.self_att:
            # ---- multi-head attention: heads batched; per-batch softmax via two small GEMMs ----
            hid = jnp.tanh(jnp.dot(xr.astype(jnp.bfloat16), wb("wh"),
                                   preferred_element_type=jnp.float32) + wf("bh"))   # (TB, heads*Hh)
            sc = jnp.dot(hid.astype(jnp.bfloat16), wb("wo"),
                         preferred_element_type=jnp.float32) + wf("bo")              # (TB, heads*A)
            mx = jnp.max(sc, axis=0, keepdims=True)          # global per-column stabilizer
            e = jnp.exp(sc - mx)
            ex = jnp.concatenate([e[:, i * A:(i + 1) * A] * xr for i in range(heads)], axis=1)
            denom = jnp.dot(Mseg, e, preferred_element_type=jnp.float32)   # (B, heads*A)
            numer = jnp.dot(Mseg, ex, preferred_element_type=jnp.float32)  # (B, heads*A)
            feat = numer / denom
        else:
            # non-default cfg path: x.mean(dim=1) over the padded output
            feat = jnp.dot(Mseg, xr, preferred_element_type=jnp.float32) * (1.0 / t_pad)

        # F.normalize(p=2, dim=1); store lane-dense (padded to a 128-lane multiple)
        nrm = jnp.sqrt(jnp.sum(feat * feat, axis=1, keepdims=True))
        feat = feat / jnp.maximum(nrm, 1e-12)
        if out_pad > out_dim:
            feat = jnp.concatenate(
                [feat, jnp.zeros((B, out_pad - out_dim), jnp.float32)], axis=1)
        o_ref[...] = feat

    out = pl.pallas_call(
        kernel,
        out_shape=jax.ShapeDtypeStruct((B, out_pad), jnp.float32),
        in_specs=[_VMEM(), _VMEM(), _VMEM()],
        out_specs=_VMEM(),
    )(xcol1, wbf, wf32)
    return out[:, :out_dim]


# ------------------------------------ main --------------------------------------
if __name__ == "__main__":
    key = jax.random.PRNGKey(0)
    kp, kx = jax.random.split(key)
    params = init_params(kp)

    B, T, Cin = 2, 64, CFG.in_channels
    lengths = (64, 48)                                  # sorted descending (pack_padded)
    x = jax.random.normal(kx, (B, T, Cin), jnp.float32)
    # zero the padded frames as a real padded batch would
    frame_mask = (jnp.arange(T)[None, :, None] < jnp.array(lengths)[:, None, None])
    x = x * frame_mask.astype(jnp.float32)

    fwd = jax.jit(cnn_rnn_encoder_forward, static_argnums=(2,))
    out = jax.block_until_ready(fwd(params, x, lengths))
    assert out.shape == (B, CFG.att_n_heads * CFG.att_in_size)
    assert bool(jnp.all(jnp.isfinite(out)))
    print("KERNEL_OK")
</pallas_src>

<mosaic_0001>
module attributes {stable_mosaic.version = 11 : i64} {
  func.func @kernel(%arg0: memref<62x16xf32, #tpu.memory_space<vmem>>, %arg1: memref<128x128xbf16, #tpu.memory_space<vmem>>, %arg2: memref<44x128xf32, #tpu.memory_space<vmem>>, %arg3: memref<2x128xf32, #tpu.memory_space<vmem>>) attributes {dimension_semantics = [], scalar_prefetch = 0 : i64, scratch_operands = 0 : i64, tpu.core_type = #tpu.core_type<tc>} {
    %c0 = arith.constant 0 : index
    %c0_0 = arith.constant 0 : index
    %0 = vector.load %arg0[%c0, %c0_0] : memref<62x16xf32, #tpu.memory_space<vmem>>, vector<62x16xf32>
    %1 = arith.truncf %0 : vector<62x16xf32> to vector<62x16xbf16>
    %c0_1 = arith.constant 0 : index
    %c0_2 = arith.constant 0 : index
    %2 = vector.load %arg1[%c0_1, %c0_2] : memref<128x128xbf16, #tpu.memory_space<vmem>>, vector<16x8xbf16>
    %cst = arith.constant dense<0.000000e+00> : vector<62x8xf32>
    %3 = tpu.matmul %1, %2, %cst {dimension_numbers = #tpu.dot_dimension_numbers<[1], [0], [0], [1], [0, 0, 1, 1], [], []>} : vector<62x16xbf16>, vector<16x8xbf16>, vector<62x8xf32> -> vector<62x8xf32>
    %c34 = arith.constant 34 : index
    %c0_3 = arith.constant 0 : index
    %4 = vector.load %arg2[%c34, %c0_3] : memref<44x128xf32, #tpu.memory_space<vmem>>, vector<1x8xf32>
    %5 = vector.broadcast %4 : vector<1x8xf32> to vector<62x8xf32>
    %6 = arith.addf %3, %5 : vector<62x8xf32>
    %c35 = arith.constant 35 : index
    %c0_4 = arith.constant 0 : index
    %7 = vector.load %arg2[%c35, %c0_4] : memref<44x128xf32, #tpu.memory_space<vmem>>, vector<1x8xf32>
    %c36 = arith.constant 36 : index
    %c0_5 = arith.constant 0 : index
    %8 = vector.load %arg2[%c36, %c0_5] : memref<44x128xf32, #tpu.memory_space<vmem>>, vector<1x8xf32>
    %cst_6 = arith.constant dense<0.000000e+00> : vector<8xf32>
    %9 = vector.multi_reduction <add>, %6, %cst_6 [0] : vector<62x8xf32> to vector<8xf32>
    %10 = vector.shape_cast %9 : vector<8xf32> to vector<1x8xf32>
    %cst_7 = arith.constant 6.200000e+01 : f32
    %11 = vector.broadcast %cst_7 : f32 to vector<1x8xf32>
    %12 = arith.divf %10, %11 : vector<1x8xf32>
    %13 = vector.broadcast %12 : vector<1x8xf32> to vector<62x8xf32>
    %14 = arith.subf %6, %13 : vector<62x8xf32>
    %15 = arith.mulf %14, %14 : vector<62x8xf32>
    %cst_8 = arith.constant dense<0.000000e+00> : vector<8xf32>
    %16 = vector.multi_reduction <add>, %15, %cst_8 [0] : vector<62x8xf32> to vector<8xf32>
    %17 = vector.shape_cast %16 : vector<8xf32> to vector<1x8xf32>
    %cst_9 = arith.constant 6.200000e+01 : f32
    %18 = vector.broadcast %cst_9 : f32 to vector<1x8xf32>
    %19 = arith.divf %17, %18 : vector<1x8xf32>
    %cst_10 = arith.constant 9.99999974E-6 : f32
    %20 = vector.broadcast %cst_10 : f32 to vector<1x8xf32>
    %21 = arith.addf %19, %20 : vector<1x8xf32>
    %22 = math.rsqrt %21 : vector<1x8xf32>
    %23 = vector.broadcast %22 : vector<1x8xf32> to vector<62x8xf32>
    %24 = arith.mulf %14, %23 : vector<62x8xf32>
    %25 = vector.broadcast %7 : vector<1x8xf32> to vector<62x8xf32>
    %26 = arith.mulf %24, %25 : vector<62x8xf32>
    %27 = vector.broadcast %8 : vector<1x8xf32> to vector<62x8xf32>
    %28 = arith.addf %26, %27 : vector<62x8xf32>
    %29 = vector.extract_strided_slice %28 {offsets = [0, 0], sizes = [14, 8], strides = [1, 1]} : vector<62x8xf32> to vector<14x8xf32>
    %30 = vector.extract_strided_slice %28 {offsets = [16, 0], sizes = [14, 8], strides = [1, 1]} : vector<62x8xf32> to vector<14x8xf32>
    %31 = vector.extract_strided_slice %28 {offsets = [1, 0], sizes = [14, 8], strides = [1, 1]} : vector<62x8xf32> to vector<14x8xf32>
    %32 = vector.extract_strided_slice %28 {offsets = [17, 0], sizes = [14, 8], strides = [1, 1]} : vector<62x8xf32> to vector<14x8xf32>
    %33 = tpu.concatenate %29, %30, %31, %32 in 1 : vector<14x8xf32>, vector<14x8xf32>, vector<14x8xf32>, vector<14x8xf32> -> vector<14x32xf32>
    %34 = vector.extract_strided_slice %28 {offsets = [31, 0], sizes = [14, 8], strides = [1, 1]} : vector<62x8xf32> to vector<14x8xf32>
    %35 = vector.extract_strided_slice %28 {offsets = [47, 0], sizes = [14, 8], strides = [1, 1]} : vector<62x8xf32> to vector<14x8xf32>
    %36 = vector.extract_strided_slice %28 {offsets = [32, 0], sizes = [14, 8], strides = [1, 1]} : vector<62x8xf32> to vector<14x8xf32>
    %37 = vector.extract_strided_slice %28 {offsets = [48, 0], sizes = [14, 8], strides = [1, 1]} : vector<62x8xf32> to vector<14x8xf32>
    %38 = tpu.concatenate %34, %35, %36, %37 in 1 : vector<14x8xf32>, vector<14x8xf32>, vector<14x8xf32>, vector<14x8xf32> -> vector<14x32xf32>
    %39 = tpu.concatenate %33, %38 in 0 : vector<14x32xf32>, vector<14x32xf32> -> vector<28x32xf32>
    %40 = arith.truncf %39 : vector<28x32xf32> to vector<28x32xbf16>
    %c16 = arith.constant 16 : index
    %c0_11 = arith.constant 0 : index
    %41 = vector.load %arg1[%c16, %c0_11] : memref<128x128xbf16, #tpu.memory_space<vmem>>, vector<32x16xbf16>
    %cst_12 = arith.constant dense<0.000000e+00> : vector<28x16xf32>
    %42 = tpu.matmul %40, %41, %cst_12 {dimension_numbers = #tpu.dot_dimension_numbers<[1], [0], [0], [1], [0, 0, 1, 1], [], []>} : vector<28x32xbf16>, vector<32x16xbf16>, vector<28x16xf32> -> vector<28x16xf32>
    %c37 = arith.constant 37 : index
    %c0_13 = arith.constant 0 : index
    %43 = vector.load %arg2[%c37, %c0_13] : memref<44x128xf32, #tpu.memory_space<vmem>>, vector<1x16xf32>
    %44 = vector.broadcast %43 : vector<1x16xf32> to vector<28x16xf32>
    %45 = arith.addf %42, %44 : vector<28x16xf32>
    %c38 = arith.constant 38 : index
    %c0_14 = arith.constant 0 : index
    %46 = vector.load %arg2[%c38, %c0_14] : memref<44x128xf32, #tpu.memory_space<vmem>>, vector<1x16xf32>
    %c39 = arith.constant 39 : index
    %c0_15 = arith.constant 0 : index
    %47 = vector.load %arg2[%c39, %c0_15] : memref<44x128xf32, #tpu.memory_space<vmem>>, vector<1x16xf32>
    %cst_16 = arith.constant dense<0.000000e+00> : vector<16xf32>
    %48 = vector.multi_reduction <add>, %45, %cst_16 [0] : vector<28x16xf32> to vector<16xf32>
    %49 = vector.shape_cast %48 : vector<16xf32> to vector<1x16xf32>
    %cst_17 = arith.constant 2.800000e+01 : f32
    %50 = vector.broadcast %cst_17 : f32 to vector<1x16xf32>
    %51 = arith.divf %49, %50 : vector<1x16xf32>
    %52 = vector.broadcast %51 : vector<1x16xf32> to vector<28x16xf32>
    %53 = arith.subf %45, %52 : vector<28x16xf32>
    %54 = arith.mulf %53, %53 : vector<28x16xf32>
    %cst_18 = arith.constant dense<0.000000e+00> : vector<16xf32>
    %55 = vector.multi_reduction <add>, %54, %cst_18 [0] : vector<28x16xf32> to vector<16xf32>
    %56 = vector.shape_cast %55 : vector<16xf32> to vector<1x16xf32>
    %cst_19 = arith.constant 2.800000e+01 : f32
    %57 = vector.broadcast %cst_19 : f32 to vector<1x16xf32>
    %58 = arith.divf %56, %57 : vector<1x16xf32>
    %cst_20 = arith.constant 9.99999974E-6 : f32
    %59 = vector.broadcast %cst_20 : f32 to vector<1x16xf32>
    %60 = arith.addf %58, %59 : vector<1x16xf32>
    %61 = math.rsqrt %60 : vector<1x16xf32>
    %62 = vector.broadcast %61 : vector<1x16xf32> to vector<28x16xf32>
    %63 = arith.mulf %53, %62 : vector<28x16xf32>
    %64 = vector.broadcast %46 : vector<1x16xf32> to vector<28x16xf32>
    %65 = arith.mulf %63, %64 : vector<28x16xf32>
    %66 = vector.broadcast %47 : vector<1x16xf32> to vector<28x16xf32>
    %67 = arith.addf %65, %66 : vector<28x16xf32>
    %68 = arith.truncf %67 : vector<28x16xf32> to vector<28x16xbf16>
    %c48 = arith.constant 48 : index
    %c0_21 = arith.constant 0 : index
    %69 = vector.load %arg1[%c48, %c0_21] : memref<128x128xbf16, #tpu.memory_space<vmem>>, vector<16x96xbf16>
    %cst_22 = arith.constant dense<0.000000e+00> : vector<28x96xf32>
    %70 = tpu.matmul %68, %69, %cst_22 {dimension_numbers = #tpu.dot_dimension_numbers<[1], [0], [0], [1], [0, 0, 1, 1], [], []>} : vector<28x16xbf16>, vector<16x96xbf16>, vector<28x96xf32> -> vector<28x96xf32>
    %c40 = arith.constant 40 : index
    %c0_23 = arith.constant 0 : index
    %71 = vector.load %arg2[%c40, %c0_23] : memref<44x128xf32, #tpu.memory_space<vmem>>, vector<1x96xf32>
    %72 = vector.broadcast %71 : vector<1x96xf32> to vector<28x96xf32>
    %73 = arith.addf %70, %72 : vector<28x96xf32>
    %74 = vector.extract_strided_slice %73 {offsets = [0, 0], sizes = [1, 96], strides = [1, 1]} : vector<28x96xf32> to vector<1x96xf32>
    %75 = vector.extract_strided_slice %73 {offsets = [14, 0], sizes = [1, 96], strides = [1, 1]} : vector<28x96xf32> to vector<1x96xf32>
    %76 = tpu.concatenate %74, %75 in 0 : vector<1x96xf32>, vector<1x96xf32> -> vector<2x96xf32>
    %77 = vector.extract_strided_slice %73 {offsets = [1, 0], sizes = [1, 96], strides = [1, 1]} : vector<28x96xf32> to vector<1x96xf32>
    %78 = vector.extract_strided_slice %73 {offsets = [15, 0], sizes = [1, 96], strides = [1, 1]} : vector<28x96xf32> to vector<1x96xf32>
    %79 = tpu.concatenate %77, %78 in 0 : vector<1x96xf32>, vector<1x96xf32> -> vector<2x96xf32>
    %80 = vector.extract_strided_slice %73 {offsets = [2, 0], sizes = [1, 96], strides = [1, 1]} : vector<28x96xf32> to vector<1x96xf32>
    %81 = vector.extract_strided_slice %73 {offsets = [16, 0], sizes = [1, 96], strides = [1, 1]} : vector<28x96xf32> to vector<1x96xf32>
    %82 = tpu.concatenate %80, %81 in 0 : vector<1x96xf32>, vector<1x96xf32> -> vector<2x96xf32>
    %83 = vector.extract_strided_slice %73 {offsets = [3, 0], sizes = [1, 96], strides = [1, 1]} : vector<28x96xf32> to vector<1x96xf32>
    %84 = vector.extract_strided_slice %73 {offsets = [17, 0], sizes = [1, 96], strides = [1, 1]} : vector<28x96xf32> to vector<1x96xf32>
    %85 = tpu.concatenate %83, %84 in 0 : vector<1x96xf32>, vector<1x96xf32> -> vector<2x96xf32>
    %86 = vector.extract_strided_slice %73 {offsets = [4, 0], sizes = [1, 96], strides = [1, 1]} : vector<28x96xf32> to vector<1x96xf32>
    %87 = vector.extract_strided_slice %73 {offsets = [18, 0], sizes = [1, 96], strides = [1, 1]} : vector<28x96xf32> to vector<1x96xf32>
    %88 = tpu.concatenate %86, %87 in 0 : vector<1x96xf32>, vector<1x96xf32> -> vector<2x96xf32>
    %89 = vector.extract_strided_slice %73 {offsets = [5, 0], sizes = [1, 96], strides = [1, 1]} : vector<28x96xf32> to vector<1x96xf32>
    %90 = vector.extract_strided_slice %73 {offsets = [19, 0], sizes = [1, 96], strides = [1, 1]} : vector<28x96xf32> to vector<1x96xf32>
    %91 = tpu.concatenate %89, %90 in 0 : vector<1x96xf32>, vector<1x96xf32> -> vector<2x96xf32>
    %92 = vector.extract_strided_slice %73 {offsets = [6, 0], sizes = [1, 96], strides = [1, 1]} : vector<28x96xf32> to vector<1x96xf32>
    %93 = vector.extract_strided_slice %73 {offsets = [20, 0], sizes = [1, 96], strides = [1, 1]} : vector<28x96xf32> to vector<1x96xf32>
    %94 = tpu.concatenate %92, %93 in 0 : vector<1x96xf32>, vector<1x96xf32> -> vector<2x96xf32>
    %95 = vector.extract_strided_slice %73 {offsets = [7, 0], sizes = [1, 96], strides = [1, 1]} : vector<28x96xf32> to vector<1x96xf32>
    %96 = vector.extract_strided_slice %73 {offsets = [21, 0], sizes = [1, 96], strides = [1, 1]} : vector<28x96xf32> to vector<1x96xf32>
    %97 = tpu.concatenate %95, %96 in 0 : vector<1x96xf32>, vector<1x96xf32> -> vector<2x96xf32>
    %98 = vector.extract_strided_slice %73 {offsets = [8, 0], sizes = [1, 96], strides = [1, 1]} : vector<28x96xf32> to vector<1x96xf32>
    %99 = vector.extract_strided_slice %73 {offsets = [22, 0], sizes = [1, 96], strides = [1, 1]} : vector<28x96xf32> to vector<1x96xf32>
    %100 = tpu.concatenate %98, %99 in 0 : vector<1x96xf32>, vector<1x96xf32> -> vector<2x96xf32>
    %101 = vector.extract_strided_slice %73 {offsets = [9, 0], sizes = [1, 96], strides = [1, 1]} : vector<28x96xf32> to vector<1x96xf32>
    %102 = vector.extract_strided_slice %73 {offsets = [23, 0], sizes = [1, 96], strides = [1, 1]} : vector<28x96xf32> to vector<1x96xf32>
    %103 = tpu.concatenate %101, %102 in 0 : vector<1x96xf32>, vector<1x96xf32> -> vector<2x96xf32>
    %104 = vector.extract_strided_slice %73 {offsets = [10, 0], sizes = [1, 96], strides = [1, 1]} : vector<28x96xf32> to vector<1x96xf32>
    %105 = vector.extract_strided_slice %73 {offsets = [24, 0], sizes = [1, 96], strides = [1, 1]} : vector<28x96xf32> to vector<1x96xf32>
    %106 = tpu.concatenate %104, %105 in 0 : vector<1x96xf32>, vector<1x96xf32> -> vector<2x96xf32>
    %107 = vector.extract_strided_slice %73 {offsets = [11, 0], sizes = [1, 96], strides = [1, 1]} : vector<28x96xf32> to vector<1x96xf32>
    %108 = vector.extract_strided_slice %73 {offsets = [25, 0], sizes = [1, 96], strides = [1, 1]} : vector<28x96xf32> to vector<1x96xf32>
    %109 = tpu.concatenate %107, %108 in 0 : vector<1x96xf32>, vector<1x96xf32> -> vector<2x96xf32>
    %110 = vector.extract_strided_slice %73 {offsets = [12, 0], sizes = [1, 96], strides = [1, 1]} : vector<28x96xf32> to vector<1x96xf32>
    %111 = vector.extract_strided_slice %73 {offsets = [26, 0], sizes = [1, 96], strides = [1, 1]} : vector<28x96xf32> to vector<1x96xf32>
    %112 = tpu.concatenate %110, %111 in 0 : vector<1x96xf32>, vector<1x96xf32> -> vector<2x96xf32>
    %113 = vector.extract_strided_slice %73 {offsets = [13, 0], sizes = [1, 96], strides = [1, 1]} : vector<28x96xf32> to vector<1x96xf32>
    %114 = vector.extract_strided_slice %73 {offsets = [27, 0], sizes = [1, 96], strides = [1, 1]} : vector<28x96xf32> to vector<1x96xf32>
    %115 = tpu.concatenate %113, %114 in 0 : vector<1x96xf32>, vector<1x96xf32> -> vector<2x96xf32>
    %c0_24 = arith.constant 0 : index
    %c0_25 = arith.constant 0 : index
    %116 = vector.load %arg2[%c0_24, %c0_25] : memref<44x128xf32, #tpu.memory_space<vmem>>, vector<32x96xf32>
    %c41 = arith.constant 41 : index
    %c0_26 = arith.constant 0 : index
    %117 = vector.load %arg2[%c41, %c0_26] : memref<44x128xf32, #tpu.memory_space<vmem>>, vector<1x96xf32>
    %cst_27 = arith.constant 0.000000e+00 : f32
    %118 = vector.broadcast %cst_27 : f32 to vector<2x32xf32>
    %cst_28 = arith.constant dense<0.000000e+00> : vector<2x96xf32>
    %119 = tpu.matmul %118, %116, %cst_28 {dimension_numbers = #tpu.dot_dimension_numbers<[1], [0], [0], [1], [0, 0, 1, 1], [], []>} : vector<2x32xf32>, vector<32x96xf32>, vector<2x96xf32> -> vector<2x96xf32>
    %120 = vector.broadcast %117 : vector<1x96xf32> to vector<2x96xf32>
    %121 = arith.addf %119, %120 : vector<2x96xf32>
    %122 = vector.extract_strided_slice %76 {offsets = [0, 0], sizes = [2, 32], strides = [1, 1]} : vector<2x96xf32> to vector<2x32xf32>
    %123 = vector.extract_strided_slice %121 {offsets = [0, 0], sizes = [2, 32], strides = [1, 1]} : vector<2x96xf32> to vector<2x32xf32>
    %124 = arith.addf %122, %123 : vector<2x32xf32>
    %125 = arith.negf %124 : vector<2x32xf32>
    %126 = math.exp %125 : vector<2x32xf32>
    %cst_29 = arith.constant 1.000000e+00 : f32
    %127 = vector.broadcast %cst_29 : f32 to vector<2x32xf32>
    %128 = arith.addf %127, %126 : vector<2x32xf32>
    %129 = arith.divf %127, %128 : vector<2x32xf32>
    %130 = vector.extract_strided_slice %76 {offsets = [0, 32], sizes = [2, 32], strides = [1, 1]} : vector<2x96xf32> to vector<2x32xf32>
    %131 = vector.extract_strided_slice %121 {offsets = [0, 32], sizes = [2, 32], strides = [1, 1]} : vector<2x96xf32> to vector<2x32xf32>
    %132 = arith.addf %130, %131 : vector<2x32xf32>
    %133 = arith.negf %132 : vector<2x32xf32>
    %134 = math.exp %133 : vector<2x32xf32>
    %cst_30 = arith.constant 1.000000e+00 : f32
    %135 = vector.broadcast %cst_30 : f32 to vector<2x32xf32>
    %136 = arith.addf %135, %134 : vector<2x32xf32>
    %137 = arith.divf %135, %136 : vector<2x32xf32>
    %138 = vector.extract_strided_slice %76 {offsets = [0, 64], sizes = [2, 32], strides = [1, 1]} : vector<2x96xf32> to vector<2x32xf32>
    %139 = vector.extract_strided_slice %121 {offsets = [0, 64], sizes = [2, 32], strides = [1, 1]} : vector<2x96xf32> to vector<2x32xf32>
    %140 = arith.mulf %129, %139 : vector<2x32xf32>
    %141 = arith.addf %138, %140 : vector<2x32xf32>
    %142 = math.tanh %141 : vector<2x32xf32>
    %cst_31 = arith.constant 1.000000e+00 : f32
    %143 = vector.broadcast %cst_31 : f32 to vector<2x32xf32>
    %144 = arith.subf %143, %137 : vector<2x32xf32>
    %145 = arith.mulf %144, %142 : vector<2x32xf32>
    %146 = arith.mulf %137, %118 : vector<2x32xf32>
    %147 = arith.addf %145, %146 : vector<2x32xf32>
    %cst_32 = arith.constant dense<0.000000e+00> : vector<2x96xf32>
    %148 = tpu.matmul %147, %116, %cst_32 {dimension_numbers = #tpu.dot_dimension_numbers<[1], [0], [0], [1], [0, 0, 1, 1], [], []>} : vector<2x32xf32>, vector<32x96xf32>, vector<2x96xf32> -> vector<2x96xf32>
    %149 = vector.broadcast %117 : vector<1x96xf32> to vector<2x96xf32>
    %150 = arith.addf %148, %149 : vector<2x96xf32>
    %151 = vector.extract_strided_slice %79 {offsets = [0, 0], sizes = [2, 32], strides = [1, 1]} : vector<2x96xf32> to vector<2x32xf32>
    %152 = vector.extract_strided_slice %150 {offsets = [0, 0], sizes = [2, 32], strides = [1, 1]} : vector<2x96xf32> to vector<2x32xf32>
    %153 = arith.addf %151, %152 : vector<2x32xf32>
    %154 = arith.negf %153 : vector<2x32xf32>
    %155 = math.exp %154 : vector<2x32xf32>
    %cst_33 = arith.constant 1.000000e+00 : f32
    %156 = vector.broadcast %cst_33 : f32 to vector<2x32xf32>
    %157 = arith.addf %156, %155 : vector<2x32xf32>
    %158 = arith.divf %156, %157 : vector<2x32xf32>
    %159 = vector.extract_strided_slice %79 {offsets = [0, 32], sizes = [2, 32], strides = [1, 1]} : vector<2x96xf32> to vector<2x32xf32>
    %160 = vector.extract_strided_slice %150 {offsets = [0, 32], sizes = [2, 32], strides = [1, 1]} : vector<2x96xf32> to vector<2x32xf32>
    %161 = arith.addf %159, %160 : vector<2x32xf32>
    %162 = arith.negf %161 : vector<2x32xf32>
    %163 = math.exp %162 : vector<2x32xf32>
    %cst_34 = arith.constant 1.000000e+00 : f32
    %164 = vector.broadcast %cst_34 : f32 to vector<2x32xf32>
    %165 = arith.addf %164, %163 : vector<2x32xf32>
    %166 = arith.divf %164, %165 : vector<2x32xf32>
    %167 = vector.extract_strided_slice %79 {offsets = [0, 64], sizes = [2, 32], strides = [1, 1]} : vector<2x96xf32> to vector<2x32xf32>
    %168 = vector.extract_strided_slice %150 {offsets = [0, 64], sizes = [2, 32], strides = [1, 1]} : vector<2x96xf32> to vector<2x32xf32>
    %169 = arith.mulf %158, %168 : vector<2x32xf32>
    %170 = arith.addf %167, %169 : vector<2x32xf32>
    %171 = math.tanh %170 : vector<2x32xf32>
    %cst_35 = arith.constant 1.000000e+00 : f32
    %172 = vector.broadcast %cst_35 : f32 to vector<2x32xf32>
    %173 = arith.subf %172, %166 : vector<2x32xf32>
    %174 = arith.mulf %173, %171 : vector<2x32xf32>
    %175 = arith.mulf %166, %147 : vector<2x32xf32>
    %176 = arith.addf %174, %175 : vector<2x32xf32>
    %cst_36 = arith.constant dense<0.000000e+00> : vector<2x96xf32>
    %177 = tpu.matmul %176, %116, %cst_36 {dimension_numbers = #tpu.dot_dimension_numbers<[1], [0], [0], [1], [0, 0, 1, 1], [], []>} : vector<2x32xf32>, vector<32x96xf32>, vector<2x96xf32> -> vector<2x96xf32>
    %178 = vector.broadcast %117 : vector<1x96xf32> to vector<2x96xf32>
    %179 = arith.addf %177, %178 : vector<2x96xf32>
    %180 = vector.extract_strided_slice %82 {offsets = [0, 0], sizes = [2, 32], strides = [1, 1]} : vector<2x96xf32> to vector<2x32xf32>
    %181 = vector.extract_strided_slice %179 {offsets = [0, 0], sizes = [2, 32], strides = [1, 1]} : vector<2x96xf32> to vector<2x32xf32>
    %182 = arith.addf %180, %181 : vector<2x32xf32>
    %183 = arith.negf %182 : vector<2x32xf32>
    %184 = math.exp %183 : vector<2x32xf32>
    %cst_37 = arith.constant 1.000000e+00 : f32
    %185 = vector.broadcast %cst_37 : f32 to vector<2x32xf32>
    %186 = arith.addf %185, %184 : vector<2x32xf32>
    %187 = arith.divf %185, %186 : vector<2x32xf32>
    %188 = vector.extract_strided_slice %82 {offsets = [0, 32], sizes = [2, 32], strides = [1, 1]} : vector<2x96xf32> to vector<2x32xf32>
    %189 = vector.extract_strided_slice %179 {offsets = [0, 32], sizes = [2, 32], strides = [1, 1]} : vector<2x96xf32> to vector<2x32xf32>
    %190 = arith.addf %188, %189 : vector<2x32xf32>
    %191 = arith.negf %190 : vector<2x32xf32>
    %192 = math.exp %191 : vector<2x32xf32>
    %cst_38 = arith.constant 1.000000e+00 : f32
    %193 = vector.broadcast %cst_38 : f32 to vector<2x32xf32>
    %194 = arith.addf %193, %192 : vector<2x32xf32>
    %195 = arith.divf %193, %194 : vector<2x32xf32>
    %196 = vector.extract_strided_slice %82 {offsets = [0, 64], sizes = [2, 32], strides = [1, 1]} : vector<2x96xf32> to vector<2x32xf32>
    %197 = vector.extract_strided_slice %179 {offsets = [0, 64], sizes = [2, 32], strides = [1, 1]} : vector<2x96xf32> to vector<2x32xf32>
    %198 = arith.mulf %187, %197 : vector<2x32xf32>
    %199 = arith.addf %196, %198 : vector<2x32xf32>
    %200 = math.tanh %199 : vector<2x32xf32>
    %cst_39 = arith.constant 1.000000e+00 : f32
    %201 = vector.broadcast %cst_39 : f32 to vector<2x32xf32>
    %202 = arith.subf %201, %195 : vector<2x32xf32>
    %203 = arith.mulf %202, %200 : vector<2x32xf32>
    %204 = arith.mulf %195, %176 : vector<2x32xf32>
    %205 = arith.addf %203, %204 : vector<2x32xf32>
    %cst_40 = arith.constant dense<0.000000e+00> : vector<2x96xf32>
    %206 = tpu.matmul %205, %116, %cst_40 {dimension_numbers = #tpu.dot_dimension_numbers<[1], [0], [0], [1], [0, 0, 1, 1], [], []>} : vector<2x32xf32>, vector<32x96xf32>, vector<2x96xf32> -> vector<2x96xf32>
    %207 = vector.broadcast %117 : vector<1x96xf32> to vector<2x96xf32>
    %208 = arith.addf %206, %207 : vector<2x96xf32>
    %209 = vector.extract_strided_slice %85 {offsets = [0, 0], sizes = [2, 32], strides = [1, 1]} : vector<2x96xf32> to vector<2x32xf32>
    %210 = vector.extract_strided_slice %208 {offsets = [0, 0], sizes = [2, 32], strides = [1, 1]} : vector<2x96xf32> to vector<2x32xf32>
    %211 = arith.addf %209, %210 : vector<2x32xf32>
    %212 = arith.negf %211 : vector<2x32xf32>
    %213 = math.exp %212 : vector<2x32xf32>
    %cst_41 = arith.constant 1.000000e+00 : f32
    %214 = vector.broadcast %cst_41 : f32 to vector<2x32xf32>
    %215 = arith.addf %214, %213 : vector<2x32xf32>
    %216 = arith.divf %214, %215 : vector<2x32xf32>
    %217 = vector.extract_strided_slice %85 {offsets = [0, 32], sizes = [2, 32], strides = [1, 1]} : vector<2x96xf32> to vector<2x32xf32>
    %218 = vector.extract_strided_slice %208 {offsets = [0, 32], sizes = [2, 32], strides = [1, 1]} : vector<2x96xf32> to vector<2x32xf32>
    %219 = arith.addf %217, %218 : vector<2x32xf32>
    %220 = arith.negf %219 : vector<2x32xf32>
    %221 = math.exp %220 : vector<2x32xf32>
    %cst_42 = arith.constant 1.000000e+00 : f32
    %222 = vector.broadcast %cst_42 : f32 to vector<2x32xf32>
    %223 = arith.addf %222, %221 : vector<2x32xf32>
    %224 = arith.divf %222, %223 : vector<2x32xf32>
    %225 = vector.extract_strided_slice %85 {offsets = [0, 64], sizes = [2, 32], strides = [1, 1]} : vector<2x96xf32> to vector<2x32xf32>
    %226 = vector.extract_strided_slice %208 {offsets = [0, 64], sizes = [2, 32], strides = [1, 1]} : vector<2x96xf32> to vector<2x32xf32>
    %227 = arith.mulf %216, %226 : vector<2x32xf32>
    %228 = arith.addf %225, %227 : vector<2x32xf32>
    %229 = math.tanh %228 : vector<2x32xf32>
    %cst_43 = arith.constant 1.000000e+00 : f32
    %230 = vector.broadcast %cst_43 : f32 to vector<2x32xf32>
    %231 = arith.subf %230, %224 : vector<2x32xf32>
    %232 = arith.mulf %231, %229 : vector<2x32xf32>
    %233 = arith.mulf %224, %205 : vector<2x32xf32>
    %234 = arith.addf %232, %233 : vector<2x32xf32>
    %cst_44 = arith.constant dense<0.000000e+00> : vector<2x96xf32>
    %235 = tpu.matmul %234, %116, %cst_44 {dimension_numbers = #tpu.dot_dimension_numbers<[1], [0], [0], [1], [0, 0, 1, 1], [], []>} : vector<2x32xf32>, vector<32x96xf32>, vector<2x96xf32> -> vector<2x96xf32>
    %236 = vector.broadcast %117 : vector<1x96xf32> to vector<2x96xf32>
    %237 = arith.addf %235, %236 : vector<2x96xf32>
    %238 = vector.extract_strided_slice %88 {offsets = [0, 0], sizes = [2, 32], strides = [1, 1]} : vector<2x96xf32> to vector<2x32xf32>
    %239 = vector.extract_strided_slice %237 {offsets = [0, 0], sizes = [2, 32], strides = [1, 1]} : vector<2x96xf32> to vector<2x32xf32>
    %240 = arith.addf %238, %239 : vector<2x32xf32>
    %241 = arith.negf %240 : vector<2x32xf32>
    %242 = math.exp %241 : vector<2x32xf32>
    %cst_45 = arith.constant 1.000000e+00 : f32
    %243 = vector.broadcast %cst_45 : f32 to vector<2x32xf32>
    %244 = arith.addf %243, %242 : vector<2x32xf32>
    %245 = arith.divf %243, %244 : vector<2x32xf32>
    %246 = vector.extract_strided_slice %88 {offsets = [0, 32], sizes = [2, 32], strides = [1, 1]} : vector<2x96xf32> to vector<2x32xf32>
    %247 = vector.extract_strided_slice %237 {offsets = [0, 32], sizes = [2, 32], strides = [1, 1]} : vector<2x96xf32> to vector<2x32xf32>
    %248 = arith.addf %246, %247 : vector<2x32xf32>
    %249 = arith.negf %248 : vector<2x32xf32>
    %250 = math.exp %249 : vector<2x32xf32>
    %cst_46 = arith.constant 1.000000e+00 : f32
    %251 = vector.broadcast %cst_46 : f32 to vector<2x32xf32>
    %252 = arith.addf %251, %250 : vector<2x32xf32>
    %253 = arith.divf %251, %252 : vector<2x32xf32>
    %254 = vector.extract_strided_slice %88 {offsets = [0, 64], sizes = [2, 32], strides = [1, 1]} : vector<2x96xf32> to vector<2x32xf32>
    %255 = vector.extract_strided_slice %237 {offsets = [0, 64], sizes = [2, 32], strides = [1, 1]} : vector<2x96xf32> to vector<2x32xf32>
    %256 = arith.mulf %245, %255 : vector<2x32xf32>
    %257 = arith.addf %254, %256 : vector<2x32xf32>
    %258 = math.tanh %257 : vector<2x32xf32>
    %cst_47 = arith.constant 1.000000e+00 : f32
    %259 = vector.broadcast %cst_47 : f32 to vector<2x32xf32>
    %260 = arith.subf %259, %253 : vector<2x32xf32>
    %261 = arith.mulf %260, %258 : vector<2x32xf32>
    %262 = arith.mulf %253, %234 : vector<2x32xf32>
    %263 = arith.addf %261, %262 : vector<2x32xf32>
    %cst_48 = arith.constant dense<0.000000e+00> : vector<2x96xf32>
    %264 = tpu.matmul %263, %116, %cst_48 {dimension_numbers = #tpu.dot_dimension_numbers<[1], [0], [0], [1], [0, 0, 1, 1], [], []>} : vector<2x32xf32>, vector<32x96xf32>, vector<2x96xf32> -> vector<2x96xf32>
    %265 = vector.broadcast %117 : vector<1x96xf32> to vector<2x96xf32>
    %266 = arith.addf %264, %265 : vector<2x96xf32>
    %267 = vector.extract_strided_slice %91 {offsets = [0, 0], sizes = [2, 32], strides = [1, 1]} : vector<2x96xf32> to vector<2x32xf32>
    %268 = vector.extract_strided_slice %266 {offsets = [0, 0], sizes = [2, 32], strides = [1, 1]} : vector<2x96xf32> to vector<2x32xf32>
    %269 = arith.addf %267, %268 : vector<2x32xf32>
    %270 = arith.negf %269 : vector<2x32xf32>
    %271 = math.exp %270 : vector<2x32xf32>
    %cst_49 = arith.constant 1.000000e+00 : f32
    %272 = vector.broadcast %cst_49 : f32 to vector<2x32xf32>
    %273 = arith.addf %272, %271 : vector<2x32xf32>
    %274 = arith.divf %272, %273 : vector<2x32xf32>
    %275 = vector.extract_strided_slice %91 {offsets = [0, 32], sizes = [2, 32], strides = [1, 1]} : vector<2x96xf32> to vector<2x32xf32>
    %276 = vector.extract_strided_slice %266 {offsets = [0, 32], sizes = [2, 32], strides = [1, 1]} : vector<2x96xf32> to vector<2x32xf32>
    %277 = arith.addf %275, %276 : vector<2x32xf32>
    %278 = arith.negf %277 : vector<2x32xf32>
    %279 = math.exp %278 : vector<2x32xf32>
    %cst_50 = arith.constant 1.000000e+00 : f32
    %280 = vector.broadcast %cst_50 : f32 to vector<2x32xf32>
    %281 = arith.addf %280, %279 : vector<2x32xf32>
    %282 = arith.divf %280, %281 : vector<2x32xf32>
    %283 = vector.extract_strided_slice %91 {offsets = [0, 64], sizes = [2, 32], strides = [1, 1]} : vector<2x96xf32> to vector<2x32xf32>
    %284 = vector.extract_strided_slice %266 {offsets = [0, 64], sizes = [2, 32], strides = [1, 1]} : vector<2x96xf32> to vector<2x32xf32>
    %285 = arith.mulf %274, %284 : vector<2x32xf32>
    %286 = arith.addf %283, %285 : vector<2x32xf32>
    %287 = math.tanh %286 : vector<2x32xf32>
    %cst_51 = arith.constant 1.000000e+00 : f32
    %288 = vector.broadcast %cst_51 : f32 to vector<2x32xf32>
    %289 = arith.subf %288, %282 : vector<2x32xf32>
    %290 = arith.mulf %289, %287 : vector<2x32xf32>
    %291 = arith.mulf %282, %263 : vector<2x32xf32>
    %292 = arith.addf %290, %291 : vector<2x32xf32>
    %cst_52 = arith.constant dense<0.000000e+00> : vector<2x96xf32>
    %293 = tpu.matmul %292, %116, %cst_52 {dimension_numbers = #tpu.dot_dimension_numbers<[1], [0], [0], [1], [0, 0, 1, 1], [], []>} : vector<2x32xf32>, vector<32x96xf32>, vector<2x96xf32> -> vector<2x96xf32>
    %294 = vector.broadcast %117 : vector<1x96xf32> to vector<2x96xf32>
    %295 = arith.addf %293, %294 : vector<2x96xf32>
    %296 = vector.extract_strided_slice %94 {offsets = [0, 0], sizes = [2, 32], strides = [1, 1]} : vector<2x96xf32> to vector<2x32xf32>
    %297 = vector.extract_strided_slice %295 {offsets = [0, 0], sizes = [2, 32], strides = [1, 1]} : vector<2x96xf32> to vector<2x32xf32>
    %298 = arith.addf %296, %297 : vector<2x32xf32>
    %299 = arith.negf %298 : vector<2x32xf32>
    %300 = math.exp %299 : vector<2x32xf32>
    %cst_53 = arith.constant 1.000000e+00 : f32
    %301 = vector.broadcast %cst_53 : f32 to vector<2x32xf32>
    %302 = arith.addf %301, %300 : vector<2x32xf32>
    %303 = arith.divf %301, %302 : vector<2x32xf32>
    %304 = vector.extract_strided_slice %94 {offsets = [0, 32], sizes = [2, 32], strides = [1, 1]} : vector<2x96xf32> to vector<2x32xf32>
    %305 = vector.extract_strided_slice %295 {offsets = [0, 32], sizes = [2, 32], strides = [1, 1]} : vector<2x96xf32> to vector<2x32xf32>
    %306 = arith.addf %304, %305 : vector<2x32xf32>
    %307 = arith.negf %306 : vector<2x32xf32>
    %308 = math.exp %307 : vector<2x32xf32>
    %cst_54 = arith.constant 1.000000e+00 : f32
    %309 = vector.broadcast %cst_54 : f32 to vector<2x32xf32>
    %310 = arith.addf %309, %308 : vector<2x32xf32>
    %311 = arith.divf %309, %310 : vector<2x32xf32>
    %312 = vector.extract_strided_slice %94 {offsets = [0, 64], sizes = [2, 32], strides = [1, 1]} : vector<2x96xf32> to vector<2x32xf32>
    %313 = vector.extract_strided_slice %295 {offsets = [0, 64], sizes = [2, 32], strides = [1, 1]} : vector<2x96xf32> to vector<2x32xf32>
    %314 = arith.mulf %303, %313 : vector<2x32xf32>
    %315 = arith.addf %312, %314 : vector<2x32xf32>
    %316 = math.tanh %315 : vector<2x32xf32>
    %cst_55 = arith.constant 1.000000e+00 : f32
    %317 = vector.broadcast %cst_55 : f32 to vector<2x32xf32>
    %318 = arith.subf %317, %311 : vector<2x32xf32>
    %319 = arith.mulf %318, %316 : vector<2x32xf32>
    %320 = arith.mulf %311, %292 : vector<2x32xf32>
    %321 = arith.addf %319, %320 : vector<2x32xf32>
    %cst_56 = arith.constant dense<0.000000e+00> : vector<2x96xf32>
    %322 = tpu.matmul %321, %116, %cst_56 {dimension_numbers = #tpu.dot_dimension_numbers<[1], [0], [0], [1], [0, 0, 1, 1], [], []>} : vector<2x32xf32>, vector<32x96xf32>, vector<2x96xf32> -> vector<2x96xf32>
    %323 = vector.broadcast %117 : vector<1x96xf32> to vector<2x96xf32>
    %324 = arith.addf %322, %323 : vector<2x96xf32>
    %325 = vector.extract_strided_slice %97 {offsets = [0, 0], sizes = [2, 32], strides = [1, 1]} : vector<2x96xf32> to vector<2x32xf32>
    %326 = vector.extract_strided_slice %324 {offsets = [0, 0], sizes = [2, 32], strides = [1, 1]} : vector<2x96xf32> to vector<2x32xf32>
    %327 = arith.addf %325, %326 : vector<2x32xf32>
    %328 = arith.negf %327 : vector<2x32xf32>
    %329 = math.exp %328 : vector<2x32xf32>
    %cst_57 = arith.constant 1.000000e+00 : f32
    %330 = vector.broadcast %cst_57 : f32 to vector<2x32xf32>
    %331 = arith.addf %330, %329 : vector<2x32xf32>
    %332 = arith.divf %330, %331 : vector<2x32xf32>
    %333 = vector.extract_strided_slice %97 {offsets = [0, 32], sizes = [2, 32], strides = [1, 1]} : vector<2x96xf32> to vector<2x32xf32>
    %334 = vector.extract_strided_slice %324 {offsets = [0, 32], sizes = [2, 32], strides = [1, 1]} : vector<2x96xf32> to vector<2x32xf32>
    %335 = arith.addf %333, %334 : vector<2x32xf32>
    %336 = arith.negf %335 : vector<2x32xf32>
    %337 = math.exp %336 : vector<2x32xf32>
    %cst_58 = arith.constant 1.000000e+00 : f32
    %338 = vector.broadcast %cst_58 : f32 to vector<2x32xf32>
    %339 = arith.addf %338, %337 : vector<2x32xf32>
    %340 = arith.divf %338, %339 : vector<2x32xf32>
    %341 = vector.extract_strided_slice %97 {offsets = [0, 64], sizes = [2, 32], strides = [1, 1]} : vector<2x96xf32> to vector<2x32xf32>
    %342 = vector.extract_strided_slice %324 {offsets = [0, 64], sizes = [2, 32], strides = [1, 1]} : vector<2x96xf32> to vector<2x32xf32>
    %343 = arith.mulf %332, %342 : vector<2x32xf32>
    %344 = arith.addf %341, %343 : vector<2x32xf32>
    %345 = math.tanh %344 : vector<2x32xf32>
    %cst_59 = arith.constant 1.000000e+00 : f32
    %346 = vector.broadcast %cst_59 : f32 to vector<2x32xf32>
    %347 = arith.subf %346, %340 : vector<2x32xf32>
    %348 = arith.mulf %347, %345 : vector<2x32xf32>
    %349 = arith.mulf %340, %321 : vector<2x32xf32>
    %350 = arith.addf %348, %349 : vector<2x32xf32>
    %cst_60 = arith.constant dense<0.000000e+00> : vector<2x96xf32>
    %351 = tpu.matmul %350, %116, %cst_60 {dimension_numbers = #tpu.dot_dimension_numbers<[1], [0], [0], [1], [0, 0, 1, 1], [], []>} : vector<2x32xf32>, vector<32x96xf32>, vector<2x96xf32> -> vector<2x96xf32>
    %352 = vector.broadcast %117 : vector<1x96xf32> to vector<2x96xf32>
    %353 = arith.addf %351, %352 : vector<2x96xf32>
    %354 = vector.extract_strided_slice %100 {offsets = [0, 0], sizes = [2, 32], strides = [1, 1]} : vector<2x96xf32> to vector<2x32xf32>
    %355 = vector.extract_strided_slice %353 {offsets = [0, 0], sizes = [2, 32], strides = [1, 1]} : vector<2x96xf32> to vector<2x32xf32>
    %356 = arith.addf %354, %355 : vector<2x32xf32>
    %357 = arith.negf %356 : vector<2x32xf32>
    %358 = math.exp %357 : vector<2x32xf32>
    %cst_61 = arith.constant 1.000000e+00 : f32
    %359 = vector.broadcast %cst_61 : f32 to vector<2x32xf32>
    %360 = arith.addf %359, %358 : vector<2x32xf32>
    %361 = arith.divf %359, %360 : vector<2x32xf32>
    %362 = vector.extract_strided_slice %100 {offsets = [0, 32], sizes = [2, 32], strides = [1, 1]} : vector<2x96xf32> to vector<2x32xf32>
    %363 = vector.extract_strided_slice %353 {offsets = [0, 32], sizes = [2, 32], strides = [1, 1]} : vector<2x96xf32> to vector<2x32xf32>
    %364 = arith.addf %362, %363 : vector<2x32xf32>
    %365 = arith.negf %364 : vector<2x32xf32>
    %366 = math.exp %365 : vector<2x32xf32>
    %cst_62 = arith.constant 1.000000e+00 : f32
    %367 = vector.broadcast %cst_62 : f32 to vector<2x32xf32>
    %368 = arith.addf %367, %366 : vector<2x32xf32>
    %369 = arith.divf %367, %368 : vector<2x32xf32>
    %370 = vector.extract_strided_slice %100 {offsets = [0, 64], sizes = [2, 32], strides = [1, 1]} : vector<2x96xf32> to vector<2x32xf32>
    %371 = vector.extract_strided_slice %353 {offsets = [0, 64], sizes = [2, 32], strides = [1, 1]} : vector<2x96xf32> to vector<2x32xf32>
    %372 = arith.mulf %361, %371 : vector<2x32xf32>
    %373 = arith.addf %370, %372 : vector<2x32xf32>
    %374 = math.tanh %373 : vector<2x32xf32>
    %cst_63 = arith.constant 1.000000e+00 : f32
    %375 = vector.broadcast %cst_63 : f32 to vector<2x32xf32>
    %376 = arith.subf %375, %369 : vector<2x32xf32>
    %377 = arith.mulf %376, %374 : vector<2x32xf32>
    %378 = arith.mulf %369, %350 : vector<2x32xf32>
    %379 = arith.addf %377, %378 : vector<2x32xf32>
    %cst_64 = arith.constant dense<0.000000e+00> : vector<2x96xf32>
    %380 = tpu.matmul %379, %116, %cst_64 {dimension_numbers = #tpu.dot_dimension_numbers<[1], [0], [0], [1], [0, 0, 1, 1], [], []>} : vector<2x32xf32>, vector<32x96xf32>, vector<2x96xf32> -> vector<2x96xf32>
    %381 = vector.broadcast %117 : vector<1x96xf32> to vector<2x96xf32>
    %382 = arith.addf %380, %381 : vector<2x96xf32>
    %383 = vector.extract_strided_slice %103 {offsets = [0, 0], sizes = [2, 32], strides = [1, 1]} : vector<2x96xf32> to vector<2x32xf32>
    %384 = vector.extract_strided_slice %382 {offsets = [0, 0], sizes = [2, 32], strides = [1, 1]} : vector<2x96xf32> to vector<2x32xf32>
    %385 = arith.addf %383, %384 : vector<2x32xf32>
    %386 = arith.negf %385 : vector<2x32xf32>
    %387 = math.exp %386 : vector<2x32xf32>
    %cst_65 = arith.constant 1.000000e+00 : f32
    %388 = vector.broadcast %cst_65 : f32 to vector<2x32xf32>
    %389 = arith.addf %388, %387 : vector<2x32xf32>
    %390 = arith.divf %388, %389 : vector<2x32xf32>
    %391 = vector.extract_strided_slice %103 {offsets = [0, 32], sizes = [2, 32], strides = [1, 1]} : vector<2x96xf32> to vector<2x32xf32>
    %392 = vector.extract_strided_slice %382 {offsets = [0, 32], sizes = [2, 32], strides = [1, 1]} : vector<2x96xf32> to vector<2x32xf32>
    %393 = arith.addf %391, %392 : vector<2x32xf32>
    %394 = arith.negf %393 : vector<2x32xf32>
    %395 = math.exp %394 : vector<2x32xf32>
    %cst_66 = arith.constant 1.000000e+00 : f32
    %396 = vector.broadcast %cst_66 : f32 to vector<2x32xf32>
    %397 = arith.addf %396, %395 : vector<2x32xf32>
    %398 = arith.divf %396, %397 : vector<2x32xf32>
    %399 = vector.extract_strided_slice %103 {offsets = [0, 64], sizes = [2, 32], strides = [1, 1]} : vector<2x96xf32> to vector<2x32xf32>
    %400 = vector.extract_strided_slice %382 {offsets = [0, 64], sizes = [2, 32], strides = [1, 1]} : vector<2x96xf32> to vector<2x32xf32>
    %401 = arith.mulf %390, %400 : vector<2x32xf32>
    %402 = arith.addf %399, %401 : vector<2x32xf32>
    %403 = math.tanh %402 : vector<2x32xf32>
    %cst_67 = arith.constant 1.000000e+00 : f32
    %404 = vector.broadcast %cst_67 : f32 to vector<2x32xf32>
    %405 = arith.subf %404, %398 : vector<2x32xf32>
    %406 = arith.mulf %405, %403 : vector<2x32xf32>
    %407 = arith.mulf %398, %379 : vector<2x32xf32>
    %408 = arith.addf %406, %407 : vector<2x32xf32>
    %cst_68 = arith.constant dense<0.000000e+00> : vector<2x96xf32>
    %409 = tpu.matmul %408, %116, %cst_68 {dimension_numbers = #tpu.dot_dimension_numbers<[1], [0], [0], [1], [0, 0, 1, 1], [], []>} : vector<2x32xf32>, vector<32x96xf32>, vector<2x96xf32> -> vector<2x96xf32>
    %410 = vector.broadcast %117 : vector<1x96xf32> to vector<2x96xf32>
    %411 = arith.addf %409, %410 : vector<2x96xf32>
    %412 = vector.extract_strided_slice %106 {offsets = [0, 0], sizes = [2, 32], strides = [1, 1]} : vector<2x96xf32> to vector<2x32xf32>
    %413 = vector.extract_strided_slice %411 {offsets = [0, 0], sizes = [2, 32], strides = [1, 1]} : vector<2x96xf32> to vector<2x32xf32>
    %414 = arith.addf %412, %413 : vector<2x32xf32>
    %415 = arith.negf %414 : vector<2x32xf32>
    %416 = math.exp %415 : vector<2x32xf32>
    %cst_69 = arith.constant 1.000000e+00 : f32
    %417 = vector.broadcast %cst_69 : f32 to vector<2x32xf32>
    %418 = arith.addf %417, %416 : vector<2x32xf32>
    %419 = arith.divf %417, %418 : vector<2x32xf32>
    %420 = vector.extract_strided_slice %106 {offsets = [0, 32], sizes = [2, 32], strides = [1, 1]} : vector<2x96xf32> to vector<2x32xf32>
    %421 = vector.extract_strided_slice %411 {offsets = [0, 32], sizes = [2, 32], strides = [1, 1]} : vector<2x96xf32> to vector<2x32xf32>
    %422 = arith.addf %420, %421 : vector<2x32xf32>
    %423 = arith.negf %422 : vector<2x32xf32>
    %424 = math.exp %423 : vector<2x32xf32>
    %cst_70 = arith.constant 1.000000e+00 : f32
    %425 = vector.broadcast %cst_70 : f32 to vector<2x32xf32>
    %426 = arith.addf %425, %424 : vector<2x32xf32>
    %427 = arith.divf %425, %426 : vector<2x32xf32>
    %428 = vector.extract_strided_slice %106 {offsets = [0, 64], sizes = [2, 32], strides = [1, 1]} : vector<2x96xf32> to vector<2x32xf32>
    %429 = vector.extract_strided_slice %411 {offsets = [0, 64], sizes = [2, 32], strides = [1, 1]} : vector<2x96xf32> to vector<2x32xf32>
    %430 = arith.mulf %419, %429 : vector<2x32xf32>
    %431 = arith.addf %428, %430 : vector<2x32xf32>
    %432 = math.tanh %431 : vector<2x32xf32>
    %cst_71 = arith.constant 1.000000e+00 : f32
    %433 = vector.broadcast %cst_71 : f32 to vector<2x32xf32>
    %434 = arith.subf %433, %427 : vector<2x32xf32>
    %435 = arith.mulf %434, %432 : vector<2x32xf32>
    %436 = arith.mulf %427, %408 : vector<2x32xf32>
    %437 = arith.addf %435, %436 : vector<2x32xf32>
    %438 = tpu.iota {dimensions = array<i32: 0>} : vector<2x1xi32>
    %c1_i32 = arith.constant 1 : i32
    %439 = vector.broadcast %c1_i32 : i32 to vector<2x1xi32>
    %440 = arith.cmpi slt, %438, %439 : vector<2x1xi32>
    %441 = arith.extui %440 : vector<2x1xi1> to vector<2x1xi32>
    %442 = arith.sitofp %441 : vector<2x1xi32> to vector<2x1xf32>
    %443 = vector.broadcast %442 : vector<2x1xf32> to vector<2x32xf32>
    %444 = arith.mulf %437, %443 : vector<2x32xf32>
    %cst_72 = arith.constant dense<0.000000e+00> : vector<2x96xf32>
    %445 = tpu.matmul %437, %116, %cst_72 {dimension_numbers = #tpu.dot_dimension_numbers<[1], [0], [0], [1], [0, 0, 1, 1], [], []>} : vector<2x32xf32>, vector<32x96xf32>, vector<2x96xf32> -> vector<2x96xf32>
    %446 = vector.broadcast %117 : vector<1x96xf32> to vector<2x96xf32>
    %447 = arith.addf %445, %446 : vector<2x96xf32>
    %448 = vector.extract_strided_slice %109 {offsets = [0, 0], sizes = [2, 32], strides = [1, 1]} : vector<2x96xf32> to vector<2x32xf32>
    %449 = vector.extract_strided_slice %447 {offsets = [0, 0], sizes = [2, 32], strides = [1, 1]} : vector<2x96xf32> to vector<2x32xf32>
    %450 = arith.addf %448, %449 : vector<2x32xf32>
    %451 = arith.negf %450 : vector<2x32xf32>
    %452 = math.exp %451 : vector<2x32xf32>
    %cst_73 = arith.constant 1.000000e+00 : f32
    %453 = vector.broadcast %cst_73 : f32 to vector<2x32xf32>
    %454 = arith.addf %453, %452 : vector<2x32xf32>
    %455 = arith.divf %453, %454 : vector<2x32xf32>
    %456 = vector.extract_strided_slice %109 {offsets = [0, 32], sizes = [2, 32], strides = [1, 1]} : vector<2x96xf32> to vector<2x32xf32>
    %457 = vector.extract_strided_slice %447 {offsets = [0, 32], sizes = [2, 32], strides = [1, 1]} : vector<2x96xf32> to vector<2x32xf32>
    %458 = arith.addf %456, %457 : vector<2x32xf32>
    %459 = arith.negf %458 : vector<2x32xf32>
    %460 = math.exp %459 : vector<2x32xf32>
    %cst_74 = arith.constant 1.000000e+00 : f32
    %461 = vector.broadcast %cst_74 : f32 to vector<2x32xf32>
    %462 = arith.addf %461, %460 : vector<2x32xf32>
    %463 = arith.divf %461, %462 : vector<2x32xf32>
    %464 = vector.extract_strided_slice %109 {offsets = [0, 64], sizes = [2, 32], strides = [1, 1]} : vector<2x96xf32> to vector<2x32xf32>
    %465 = vector.extract_strided_slice %447 {offsets = [0, 64], sizes = [2, 32], strides = [1, 1]} : vector<2x96xf32> to vector<2x32xf32>
    %466 = arith.mulf %455, %465 : vector<2x32xf32>
    %467 = arith.addf %464, %466 : vector<2x32xf32>
    %468 = math.tanh %467 : vector<2x32xf32>
    %cst_75 = arith.constant 1.000000e+00 : f32
    %469 = vector.broadcast %cst_75 : f32 to vector<2x32xf32>
    %470 = arith.subf %469, %463 : vector<2x32xf32>
    %471 = arith.mulf %470, %468 : vector<2x32xf32>
    %472 = arith.mulf %463, %437 : vector<2x32xf32>
    %473 = arith.addf %471, %472 : vector<2x32xf32>
    %474 = tpu.iota {dimensions = array<i32: 0>} : vector<2x1xi32>
    %c1_i32_76 = arith.constant 1 : i32
    %475 = vector.broadcast %c1_i32_76 : i32 to vector<2x1xi32>
    %476 = arith.cmpi slt, %474, %475 : vector<2x1xi32>
    %477 = arith.extui %476 : vector<2x1xi1> to vector<2x1xi32>
    %478 = arith.sitofp %477 : vector<2x1xi32> to vector<2x1xf32>
    %479 = vector.broadcast %478 : vector<2x1xf32> to vector<2x32xf32>
    %480 = arith.mulf %473, %479 : vector<2x32xf32>
    %cst_77 = arith.constant dense<0.000000e+00> : vector<2x96xf32>
    %481 = tpu.matmul %473, %116, %cst_77 {dimension_numbers = #tpu.dot_dimension_numbers<[1], [0], [0], [1], [0, 0, 1, 1], [], []>} : vector<2x32xf32>, vector<32x96xf32>, vector<2x96xf32> -> vector<2x96xf32>
    %482 = vector.broadcast %117 : vector<1x96xf32> to vector<2x96xf32>
    %483 = arith.addf %481, %482 : vector<2x96xf32>
    %484 = vector.extract_strided_slice %112 {offsets = [0, 0], sizes = [2, 32], strides = [1, 1]} : vector<2x96xf32> to vector<2x32xf32>
    %485 = vector.extract_strided_slice %483 {offsets = [0, 0], sizes = [2, 32], strides = [1, 1]} : vector<2x96xf32> to vector<2x32xf32>
    %486 = arith.addf %484, %485 : vector<2x32xf32>
    %487 = arith.negf %486 : vector<2x32xf32>
    %488 = math.exp %487 : vector<2x32xf32>
    %cst_78 = arith.constant 1.000000e+00 : f32
    %489 = vector.broadcast %cst_78 : f32 to vector<2x32xf32>
    %490 = arith.addf %489, %488 : vector<2x32xf32>
    %491 = arith.divf %489, %490 : vector<2x32xf32>
    %492 = vector.extract_strided_slice %112 {offsets = [0, 32], sizes = [2, 32], strides = [1, 1]} : vector<2x96xf32> to vector<2x32xf32>
    %493 = vector.extract_strided_slice %483 {offsets = [0, 32], sizes = [2, 32], strides = [1, 1]} : vector<2x96xf32> to vector<2x32xf32>
    %494 = arith.addf %492, %493 : vector<2x32xf32>
    %495 = arith.negf %494 : vector<2x32xf32>
    %496 = math.exp %495 : vector<2x32xf32>
    %cst_79 = arith.constant 1.000000e+00 : f32
    %497 = vector.broadcast %cst_79 : f32 to vector<2x32xf32>
    %498 = arith.addf %497, %496 : vector<2x32xf32>
    %499 = arith.divf %497, %498 : vector<2x32xf32>
    %500 = vector.extract_strided_slice %112 {offsets = [0, 64], sizes = [2, 32], strides = [1, 1]} : vector<2x96xf32> to vector<2x32xf32>
    %501 = vector.extract_strided_slice %483 {offsets = [0, 64], sizes = [2, 32], strides = [1, 1]} : vector<2x96xf32> to vector<2x32xf32>
    %502 = arith.mulf %491, %501 : vector<2x32xf32>
    %503 = arith.addf %500, %502 : vector<2x32xf32>
    %504 = math.tanh %503 : vector<2x32xf32>
    %cst_80 = arith.constant 1.000000e+00 : f32
    %505 = vector.broadcast %cst_80 : f32 to vector<2x32xf32>
    %506 = arith.subf %505, %499 : vector<2x32xf32>
    %507 = arith.mulf %506, %504 : vector<2x32xf32>
    %508 = arith.mulf %499, %473 : vector<2x32xf32>
    %509 = arith.addf %507, %508 : vector<2x32xf32>
    %510 = tpu.iota {dimensions = array<i32: 0>} : vector<2x1xi32>
    %c1_i32_81 = arith.constant 1 : i32
    %511 = vector.broadcast %c1_i32_81 : i32 to vector<2x1xi32>
    %512 = arith.cmpi slt, %510, %511 : vector<2x1xi32>
    %513 = arith.extui %512 : vector<2x1xi1> to vector<2x1xi32>
    %514 = arith.sitofp %513 : vector<2x1xi32> to vector<2x1xf32>
    %515 = vector.broadcast %514 : vector<2x1xf32> to vector<2x32xf32>
    %516 = arith.mulf %509, %515 : vector<2x32xf32>
    %cst_82 = arith.constant dense<0.000000e+00> : vector<2x96xf32>
    %517 = tpu.matmul %509, %116, %cst_82 {dimension_numbers = #tpu.dot_dimension_numbers<[1], [0], [0], [1], [0, 0, 1, 1], [], []>} : vector<2x32xf32>, vector<32x96xf32>, vector<2x96xf32> -> vector<2x96xf32>
    %518 = vector.broadcast %117 : vector<1x96xf32> to vector<2x96xf32>
    %519 = arith.addf %517, %518 : vector<2x96xf32>
    %520 = vector.extract_strided_slice %115 {offsets = [0, 0], sizes = [2, 32], strides = [1, 1]} : vector<2x96xf32> to vector<2x32xf32>
    %521 = vector.extract_strided_slice %519 {offsets = [0, 0], sizes = [2, 32], strides = [1, 1]} : vector<2x96xf32> to vector<2x32xf32>
    %522 = arith.addf %520, %521 : vector<2x32xf32>
    %523 = arith.negf %522 : vector<2x32xf32>
    %524 = math.exp %523 : vector<2x32xf32>
    %cst_83 = arith.constant 1.000000e+00 : f32
    %525 = vector.broadcast %cst_83 : f32 to vector<2x32xf32>
    %526 = arith.addf %525, %524 : vector<2x32xf32>
    %527 = arith.divf %525, %526 : vector<2x32xf32>
    %528 = vector.extract_strided_slice %115 {offsets = [0, 32], sizes = [2, 32], strides = [1, 1]} : vector<2x96xf32> to vector<2x32xf32>
    %529 = vector.extract_strided_slice %519 {offsets = [0, 32], sizes = [2, 32], strides = [1, 1]} : vector<2x96xf32> to vector<2x32xf32>
    %530 = arith.addf %528, %529 : vector<2x32xf32>
    %531 = arith.negf %530 : vector<2x32xf32>
    %532 = math.exp %531 : vector<2x32xf32>
    %cst_84 = arith.constant 1.000000e+00 : f32
    %533 = vector.broadcast %cst_84 : f32 to vector<2x32xf32>
    %534 = arith.addf %533, %532 : vector<2x32xf32>
    %535 = arith.divf %533, %534 : vector<2x32xf32>
    %536 = vector.extract_strided_slice %115 {offsets = [0, 64], sizes = [2, 32], strides = [1, 1]} : vector<2x96xf32> to vector<2x32xf32>
    %537 = vector.extract_strided_slice %519 {offsets = [0, 64], sizes = [2, 32], strides = [1, 1]} : vector<2x96xf32> to vector<2x32xf32>
    %538 = arith.mulf %527, %537 : vector<2x32xf32>
    %539 = arith.addf %536, %538 : vector<2x32xf32>
    %540 = math.tanh %539 : vector<2x32xf32>
    %cst_85 = arith.constant 1.000000e+00 : f32
    %541 = vector.broadcast %cst_85 : f32 to vector<2x32xf32>
    %542 = arith.subf %541, %535 : vector<2x32xf32>
    %543 = arith.mulf %542, %540 : vector<2x32xf32>
    %544 = arith.mulf %535, %509 : vector<2x32xf32>
    %545 = arith.addf %543, %544 : vector<2x32xf32>
    %546 = tpu.iota {dimensions = array<i32: 0>} : vector<2x1xi32>
    %c1_i32_86 = arith.constant 1 : i32
    %547 = vector.broadcast %c1_i32_86 : i32 to vector<2x1xi32>
    %548 = arith.cmpi slt, %546, %547 : vector<2x1xi32>
    %549 = arith.extui %548 : vector<2x1xi1> to vector<2x1xi32>
    %550 = arith.sitofp %549 : vector<2x1xi32> to vector<2x1xf32>
    %551 = vector.broadcast %550 : vector<2x1xf32> to vector<2x32xf32>
    %552 = arith.mulf %545, %551 : vector<2x32xf32>
    %553 = tpu.concatenate %147, %176, %205, %234, %263, %292, %321, %350, %379, %408, %444, %480, %516, %552 in 0 : vector<2x32xf32>, vector<2x32xf32>, vector<2x32xf32>, vector<2x32xf32>, vector<2x32xf32>, vector<2x32xf32>, vector<2x32xf32>, vector<2x32xf32>, vector<2x32xf32>, vector<2x32xf32>, vector<2x32xf32>, vector<2x32xf32>, vector<2x32xf32>, vector<2x32xf32> -> vector<28x32xf32>
    %c32 = arith.constant 32 : index
    %c0_87 = arith.constant 0 : index
    %554 = vector.load %arg2[%c32, %c0_87] : memref<44x128xf32, #tpu.memory_space<vmem>>, vector<2x28xf32>
    %555 = arith.truncf %553 : vector<28x32xf32> to vector<28x32xbf16>
    %c64 = arith.constant 64 : index
    %c0_88 = arith.constant 0 : index
    %556 = vector.load %arg1[%c64, %c0_88] : memref<128x128xbf16, #tpu.memory_space<vmem>>, vector<32x32xbf16>
    %cst_89 = arith.constant dense<0.000000e+00> : vector<28x32xf32>
    %557 = tpu.matmul %555, %556, %cst_89 {dimension_numbers = #tpu.dot_dimension_numbers<[1], [0], [0], [1], [0, 0, 1, 1], [], []>} : vector<28x32xbf16>, vector<32x32xbf16>, vector<28x32xf32> -> vector<28x32xf32>
    %c42 = arith.constant 42 : index
    %c0_90 = arith.constant 0 : index
    %558 = vector.load %arg2[%c42, %c0_90] : memref<44x128xf32, #tpu.memory_space<vmem>>, vector<1x32xf32>
    %559 = vector.broadcast %558 : vector<1x32xf32> to vector<28x32xf32>
    %560 = arith.addf %557, %559 : vector<28x32xf32>
    %561 = math.tanh %560 : vector<28x32xf32>
    %562 = arith.truncf %561 : vector<28x32xf32> to vector<28x32xbf16>
    %c96 = arith.constant 96 : index
    %c0_91 = arith.constant 0 : index
    %563 = vector.load %arg1[%c96, %c0_91] : memref<128x128xbf16, #tpu.memory_space<vmem>>, vector<32x64xbf16>
    %cst_92 = arith.constant dense<0.000000e+00> : vector<28x64xf32>
    %564 = tpu.matmul %562, %563, %cst_92 {dimension_numbers = #tpu.dot_dimension_numbers<[1], [0], [0], [1], [0, 0, 1, 1], [], []>} : vector<28x32xbf16>, vector<32x64xbf16>, vector<28x64xf32> -> vector<28x64xf32>
    %c43 = arith.constant 43 : index
    %c0_93 = arith.constant 0 : index
    %565 = vector.load %arg2[%c43, %c0_93] : memref<44x128xf32, #tpu.memory_space<vmem>>, vector<1x64xf32>
    %566 = vector.broadcast %565 : vector<1x64xf32> to vector<28x64xf32>
    %567 = arith.addf %564, %566 : vector<28x64xf32>
    %cst_94 = arith.constant dense<0xFF800000> : vector<64xf32>
    %568 = vector.multi_reduction <maximumf>, %567, %cst_94 [0] : vector<28x64xf32> to vector<64xf32>
    %569 = vector.shape_cast %568 : vector<64xf32> to vector<1x64xf32>
    %570 = vector.broadcast %569 : vector<1x64xf32> to vector<28x64xf32>
    %571 = arith.subf %567, %570 : vector<28x64xf32>
    %572 = math.exp %571 : vector<28x64xf32>
    %573 = vector.extract_strided_slice %572 {offsets = [0, 0], sizes = [28, 32], strides = [1, 1]} : vector<28x64xf32> to vector<28x32xf32>
    %574 = arith.mulf %573, %553 : vector<28x32xf32>
    %575 = vector.extract_strided_slice %572 {offsets = [0, 32], sizes = [28, 32], strides = [1, 1]} : vector<28x64xf32> to vector<28x32xf32>
    %576 = arith.mulf %575, %553 : vector<28x32xf32>
    %577 = tpu.concatenate %574, %576 in 1 : vector<28x32xf32>, vector<28x32xf32> -> vector<28x64xf32>
    %cst_95 = arith.constant dense<0.000000e+00> : vector<2x64xf32>
    %578 = tpu.matmul %554, %572, %cst_95 {dimension_numbers = #tpu.dot_dimension_numbers<[1], [0], [0], [1], [0, 0, 1, 1], [], []>} : vector<2x28xf32>, vector<28x64xf32>, vector<2x64xf32> -> vector<2x64xf32>
    %cst_96 = arith.constant dense<0.000000e+00> : vector<2x64xf32>
    %579 = tpu.matmul %554, %577, %cst_96 {dimension_numbers = #tpu.dot_dimension_numbers<[1], [0], [0], [1], [0, 0, 1, 1], [], []>} : vector<2x28xf32>, vector<28x64xf32>, vector<2x64xf32> -> vector<2x64xf32>
    %580 = arith.divf %579, %578 : vector<2x64xf32>
    %581 = arith.mulf %580, %580 : vector<2x64xf32>
    %cst_97 = arith.constant dense<0.000000e+00> : vector<2xf32>
    %582 = vector.multi_reduction <add>, %581, %cst_97 [1] : vector<2x64xf32> to vector<2xf32>
    %583 = vector.shape_cast %582 : vector<2xf32> to vector<2x1xf32>
    %584 = math.sqrt %583 : vector<2x1xf32>
    %cst_98 = arith.constant 9.99999996E-13 : f32
    %585 = vector.broadcast %cst_98 : f32 to vector<2x1xf32>
    %586 = arith.maximumf %584, %585 : vector<2x1xf32>
    %587 = vector.broadcast %586 : vector<2x1xf32> to vector<2x64xf32>
    %588 = arith.divf %580, %587 : vector<2x64xf32>
    %cst_99 = arith.constant 0.000000e+00 : f32
    %589 = vector.broadcast %cst_99 : f32 to vector<2x64xf32>
    %590 = tpu.concatenate %588, %589 in 1 : vector<2x64xf32>, vector<2x64xf32> -> vector<2x128xf32>
    %c0_100 = arith.constant 0 : index
    %c0_101 = arith.constant 0 : index
    %591 = vector.load %arg3[%c0_100, %c0_101] : memref<2x128xf32, #tpu.memory_space<vmem>>, vector<2x128xf32>
    tpu.vector_store %arg3[%c0_100, %c0_101], %590 {strides = array<i32>} : memref<2x128xf32, #tpu.memory_space<vmem>>, vector<2x128xf32>,
    return
  }
}

</mosaic_0001>

<llo_original>
// kernel: cnn_rnn_encoder_forward.1
$region0: #{cnn_rnn_encoder_forward.1}
  #allocation0 [shape = 'u32[]', space=smem, size = 0x4, offset = 0x4, fixed_abs, tag = 'smem constant byte address 0x4 - core index']
  #allocation1 [shape = 'u32[72,128]{1,0:T(1,128)}', space=vmem, size = 0x9000, scoped, tag = 'internal scratch']
  %s0 = inlined_call_operand.vmem [shape: f32[62,16], index: 0, kind: input, shape index: {}]
  %s1 = inlined_call_operand.vmem [shape: bf16[128,128], index: 1, kind: input, shape index: {}]
  %s2 = inlined_call_operand.vmem [shape: f32[44,128], index: 2, kind: input, shape index: {}]
  %s3 = inlined_call_operand.hbm [shape: f32[2,128], index: 3, kind: output, shape index: {}]
  %s4 = sld [smem:[#allocation0]]
  $region22: #{cnn_rnn_encoder_forward.1} parent=0
    _
  %s6 = ssub.s32 1, %s4
  %s7 = scalar_select 0, %s6, %s4
  $region1: #{cnn_rnn_encoder_forward.1} parent=0
    #allocation2 [shape = 'u8[1024]{0}', space=vmem, size = 0x400, scoped, tag = 'output window, operand 0, single buffered']
    #allocation3 [shape = 's32[1]{0}', space=sflag, size = 0x4, scoped, tag = 'scoped memory for cnn_rnn_encoder_forward.1']
    %8 = vsyncpa [#allocation3], 0
    // Predicated region
    $region2: #{cnn_rnn_encoder_forward.1} parent=1 // pred_check
      _
    $region3: #{cnn_rnn_encoder_forward.1} parent=1 // pred_check_branch
      %10 = sbr.rel (0) target = $region5
    $region4: #{cnn_rnn_encoder_forward.1} parent=1 // pred_region
      _
    $region5: #{cnn_rnn_encoder_forward.1} parent=1 // pred_fallthru
      _
    // Predicated region
    $region6: #{cnn_rnn_encoder_forward.1} parent=1 // pred_check
      _
    $region7: #{cnn_rnn_encoder_forward.1} parent=1 // pred_check_branch
      %12 = sbr.rel (0) target = $region9
    $region8: #{cnn_rnn_encoder_forward.1} parent=1 // pred_region
      _
    $region9: #{cnn_rnn_encoder_forward.1} parent=1 // pred_fallthru
      _
    // Predicated region
    $region10: #{cnn_rnn_encoder_forward.1} parent=1 // pred_check
      _
    $region11: #{cnn_rnn_encoder_forward.1} parent=1 // pred_check_branch
      %14 = sbr.rel (0) target = $region13
    $region12: #{cnn_rnn_encoder_forward.1} parent=1 // pred_region
      _
    $region13: #{cnn_rnn_encoder_forward.1} parent=1 // pred_fallthru
      _
    %v16 = vld [vmem:[%s0] sm:$0xff]
    %v17 = vld [vmem:[%s0 + $0x8] sm:$0xff]
    %v18 = vld [vmem:[%s0 + $0x10] sm:$0xff]
    %v19 = vld [vmem:[%s0 + $0x18] sm:$0xff]
    %v20 = vld [vmem:[%s0 + $0x20] sm:$0xff]
    %v21 = vld [vmem:[%s0 + $0x28] sm:$0xff]
    %v22 = vld [vmem:[%s0 + $0x30] sm:$0xff]
    %v23 = vld [vmem:[%s0 + $0x38] sm:$0x3f]
    %v24 = vpack.c.bf16 %v17, %v16
    %v25 = vpack.c.bf16 %v19, %v18
    %v26 = vpack.c.bf16 %v21, %v20
    %v27 = vpack.c.bf16 %v23, %v22
    %v28 = vld [vmem:[%s1] sm:$0xf]
    %v29 = vld [vmem:[%s1 + $0x4] sm:$0xf]
    %v30 = vld [vmem:[%s2 + $0x22] sm:$0x1]
    %v31 = vperm.slane %v30, 0
    %v34 = vunpack.c.l.b16 %v28
    %v35 = vunpack.c.l.b16 %v29
    %v36 = vpack.c.b16 %v35, %v34
    %vm38 = vcmask 130048
    %v40 = vsel %vm38, %v24, 0
    %v43 = vsel %vm38, %v25, 0
    %v46 = vsel %vm38, %v26, 0
    %v49 = vsel %vm38, %v27, 0
    %51 = vmatpush.bf16.msra.mxu0 0
    %52 = vmatpush.bf16.msra.mxu0 0
    %53 = vmatpush.bf16.msra.mxu0 0
    %54 = vmatpush.bf16.msra.mxu0 0
    %55 = vmatpush.bf16.msra.mxu0 0
    %56 = vmatpush.bf16.msra.mxu0 0
    %57 = vmatpush.bf16.msra.mxu0 0
    %58 = vmatpush.bf16.msra.mxu0 %v36
    %59 = vmatmul.bf16.gmra.mxu0 %v40
    %v60 = vpop.f32.mrf.mxu0
    %v61 = vadd.f32 %v31, %v60
    %v62 = vpop.f32.mrf.mxu0
    %v63 = vadd.f32 %v31, %v62
    %64 = vmatmul.bf16.gmra.mxu0 %v43
    %v65 = vpop.f32.mrf.mxu0
    %v66 = vadd.f32 %v31, %v65
    %v67 = vpop.f32.mrf.mxu0
    %v68 = vadd.f32 %v31, %v67
    %69 = vmatmul.bf16.gmra.mxu0 %v46
    %v70 = vpop.f32.mrf.mxu0
    %v71 = vadd.f32 %v31, %v70
    %v72 = vpop.f32.mrf.mxu0
    %v73 = vadd.f32 %v31, %v72
    %74 = vmatmul.bf16.gmra.mxu0 %v49
    %v75 = vpop.f32.mrf.mxu0
    %v76 = vadd.f32 %v31, %v75
    %v77 = vpop.f32.mrf.mxu0
    %v78 = vadd.f32 %v31, %v77
    %79 = vdwg.mxu0
    %v80 = vld [vmem:[%s2 + $0x23] sm:$0x1]
    %v81 = vld [vmem:[%s2 + $0x24] sm:$0x1]
    %vm82 = vcmask 64512
    %v83 = vsel %vm82, %v61, 0.0
    %v84 = vsel %vm82, %v63, 0.0
    %v85 = vadd.f32 %v83, %v84
    %v86 = vsel %vm82, %v66, 0.0
    %v87 = vadd.f32 %v85, %v86
    %v88 = vsel %vm82, %v68, 0.0
    %v89 = vadd.f32 %v87, %v88
    %v90 = vsel %vm82, %v71, 0.0
    %v91 = vadd.f32 %v89, %v90
    %v92 = vsel %vm82, %v73, 0.0
    %v93 = vadd.f32 %v91, %v92
    %v94 = vsel %vm82, %v76, 0.0
    %v95 = vadd.f32 %v93, %v94
    %vm96 = vcmask 62464
    %v97 = vsel %vm96, %v78, 0.0
    %v98 = vadd.f32 %v95, %v97
    %v99 = vrot.slane %v98, 4
    %v100 = vadd.f32 %v98, %v99
    %v101 = vrot.slane %v100, 2
    %v102 = vadd.f32 %v100, %v101
    %v103 = vrot.slane %v102, 1
    %v104 = vadd.f32 %v102, %v103
    %v105 = vrcp.pop 62.0
    %v106 = vmul.f32 62.0, %v105
    %v107 = vsub.f32 1.0, %v106
    %v108 = vmul.f32 %v105, %v107
    %v109 = vadd.f32 %v105, %v108
    %vm110 = vweird.f32 %v105
    %v111 = vsel %vm110, %v105, %v109
    %v112 = vmul.f32 %v104, %v111
    %v113 = vsub.f32 %v61, %v112
    %v114 = vsub.f32 %v63, %v112
    %v115 = vsub.f32 %v66, %v112
    %v116 = vsub.f32 %v68, %v112
    %v117 = vsub.f32 %v71, %v112
    %v118 = vsub.f32 %v73, %v112
    %v119 = vsub.f32 %v76, %v112
    %v120 = vsub.f32 %v78, %v112
    %v121 = vmul.f32 %v113, %v113
    %v122 = vmul.f32 %v114, %v114
    %v123 = vmul.f32 %v115, %v115
    %v124 = vmul.f32 %v116, %v116
    %v125 = vmul.f32 %v117, %v117
    %v126 = vmul.f32 %v118, %v118
    %v127 = vmul.f32 %v119, %v119
    %v128 = vmul.f32 %v120, %v120
    %v129 = vsel %vm82, %v121, 0.0
    %v130 = vsel %vm82, %v122, 0.0
    %v131 = vadd.f32 %v129, %v130
    %v132 = vsel %vm82, %v123, 0.0
    %v133 = vadd.f32 %v131, %v132
    %v134 = vsel %vm82, %v124, 0.0
    %v135 = vadd.f32 %v133, %v134
    %v136 = vsel %vm82, %v125, 0.0
    %v137 = vadd.f32 %v135, %v136
    %v138 = vsel %vm82, %v126, 0.0
    %v139 = vadd.f32 %v137, %v138
    %v140 = vsel %vm82, %v127, 0.0
    %v141 = vadd.f32 %v139, %v140
    %v142 = vsel %vm96, %v128, 0.0
    %v143 = vadd.f32 %v141, %v142
    %v144 = vrot.slane %v143, 4
    %v145 = vadd.f32 %v143, %v144
    %v146 = vrot.slane %v145, 2
    %v147 = vadd.f32 %v145, %v146
    %v148 = vrot.slane %v147, 1
    %v149 = vadd.f32 %v147, %v148
    %v150 = vmul.f32 %v149, %v111
    %v151 = vadd.f32 %v150, 1e-05
    %v152 = vrsqrt.pop %v151
    %v153 = vmul.f32 %v152, %v151
    %v154 = vmul.f32 %v153, %v152
    %v155 = vmul.f32 0.5, %v154
    %v156 = vsub.f32 1.5, %v155
    %v157 = vmul.f32 %v152, %v156
    %vm158 = vweird.f32 %v151
    %vm159 = vweird.f32 %v152
    %vm160 = vmor %vm158, %vm159
    %v161 = vsel %vm160, %v152, %v157
    %v162 = vmul.f32 %v113, %v161
    %v163 = vmul.f32 %v114, %v161
    %v164 = vmul.f32 %v115, %v161
    %v165 = vmul.f32 %v116, %v161
    %v166 = vmul.f32 %v117, %v161
    %v167 = vmul.f32 %v118, %v161
    %v168 = vmul.f32 %v119, %v161
    %v169 = vmul.f32 %v120, %v161
    %v170 = vperm.slane %v80, 0
    %v171 = vmul.f32 %v162, %v170
    %v172 = vmul.f32 %v163, %v170
    %v173 = vmul.f32 %v164, %v170
    %v174 = vmul.f32 %v165, %v170
    %v175 = vmul.f32 %v166, %v170
    %v176 = vmul.f32 %v167, %v170
    %v177 = vmul.f32 %v168, %v170
    %v178 = vmul.f32 %v169, %v170
    %v179 = vperm.slane %v81, 0
    %v180 = vadd.f32 %v171, %v179
    %v181 = vadd.f32 %v172, %v179
    %v182 = vadd.f32 %v173, %v179
    %v183 = vadd.f32 %v174, %v179
    %v184 = vadd.f32 %v175, %v179
    %v185 = vadd.f32 %v176, %v179
    %v186 = vadd.f32 %v177, %v179
    %v187 = vadd.f32 %v178, %v179
    %190 = vrot.lane.b32.xlu0 %v182, 8
    %v191 = vpop.permute.xlu0 %190
    %192 = vrot.lane.b32.xlu0 %v183, 8
    %v193 = vpop.permute.xlu0 %192
    %vm198 = vcmask 1046528
    %v199 = vrot.slane %v180, 1
    %v200 = vrot.slane %v181, 1
    %v201 = vsel %vm198, %v199, %v200
    %202 = vrot.lane.b32.xlu0 %v201, 16
    %v203 = vpop.permute.xlu0 %202
    %204 = vrot.lane.b32.xlu0 %v200, 16
    %v205 = vpop.permute.xlu0 %204
    %v208 = vrot.slane %v182, 1
    %v209 = vrot.slane %v183, 1
    %v210 = vsel %vm198, %v208, %v209
    %211 = vrot.lane.b32.xlu0 %v210, 24
    %v212 = vpop.permute.xlu0 %211
    %213 = vrot.lane.b32.xlu0 %v209, 24
    %v214 = vpop.permute.xlu0 %213
    %v217 = vsel %vm82, %v180, %v191
    %v218 = vsel %vm82, %v181, %v193
    %v219 = vsel %vm38, %v217, %v203
    %v220 = vsel %vm38, %v218, %v205
    %vm221 = vcmask 195584
    %v222 = vsel %vm221, %v219, %v212
    %v223 = vsel %vm221, %v220, %v214
    %227 = vrot.lane.b32.xlu0 %v185, 8
    %v228 = vpop.permute.xlu0 %227
    %229 = vrot.lane.b32.xlu0 %v186, 8
    %v230 = vpop.permute.xlu0 %229
    %231 = vrot.lane.b32.xlu0 %v187, 8
    %v232 = vpop.permute.xlu0 %231
    %v237 = vrot.slane %v184, 1
    %v238 = vrot.slane %v185, 1
    %v239 = vsel %vm198, %v237, %v238
    %240 = vrot.lane.b32.xlu0 %v237, 16
    %v241 = vpop.permute.xlu0 %240
    %242 = vrot.lane.b32.xlu0 %v239, 16
    %v243 = vpop.permute.xlu0 %242
    %244 = vrot.lane.b32.xlu0 %v238, 16
    %v245 = vpop.permute.xlu0 %244
    %v249 = vrot.slane %v186, 1
    %v250 = vrot.slane %v187, 1
    %v251 = vsel %vm198, %v249, %v250
    %252 = vrot.lane.b32.xlu0 %v249, 24
    %v253 = vpop.permute.xlu0 %252
    %254 = vrot.lane.b32.xlu0 %v251, 24
    %v255 = vpop.permute.xlu0 %254
    %256 = vrot.lane.b32.xlu0 %v250, 24
    %v257 = vpop.permute.xlu0 %256
    %v261 = vsel %vm82, %v183, %v228
    %v262 = vsel %vm82, %v184, %v230
    %v263 = vsel %vm82, %v185, %v232
    %v264 = vsel %vm38, %v261, %v241
    %v265 = vsel %vm38, %v262, %v243
    %v266 = vsel %vm38, %v263, %v245
    %v267 = vsel %vm221, %v264, %v253
    %v268 = vsel %vm221, %v265, %v255
    %v269 = vsel %vm221, %v266, %v257
    %v273 = vrot.slane %v267, 1
    %v274 = vrot.slane %v268, 1
    %v275 = vsel %vm198, %v273, %v274
    %v276 = vrot.slane %v269, 1
    %v277 = vsel %vm198, %v274, %v276
    %vm281 = vcmask 1045504
    %v282 = vsel %vm281, %v223, %v275
    %v283 = vpack.c.bf16 %v282, %v222
    %v284 = vpack.c.bf16 %v276, %v277
    %v285 = vld [vmem:[%s1 + $0x8] sm:$0xf]
    %v286 = vld [vmem:[%s1 + $0xc] sm:$0xf]
    %v287 = vld [vmem:[%s1 + $0x10] sm:$0xf]
    %v288 = vld [vmem:[%s1 + $0x14] sm:$0xf]
    %v289 = vld [vmem:[%s2 + $0x25] sm:$0x1]
    %v290 = vperm.slane %v289, 0
    %v295 = vunpack.c.l.b16 %v285
    %v296 = vunpack.c.l.b16 %v286
    %v297 = vunpack.c.l.b16 %v287
    %v298 = vunpack.c.l.b16 %v288
    %v299 = vpack.c.b16 %v296, %v295
    %v300 = vpack.c.b16 %v298, %v297
    %vm303 = vcmask 261120
    %v305 = vsel %vm303, %v283, 0
    %v308 = vsel %vm303, %v284, 0
    %310 = vmatpush.bf16.msra.mxu0 0
    %311 = vmatpush.bf16.msra.mxu0 0
    %312 = vmatpush.bf16.msra.mxu0 0
    %313 = vmatpush.bf16.msra.mxu0 0
    %314 = vmatpush.bf16.msra.mxu0 0
    %315 = vmatpush.bf16.msra.mxu0 0
    %316 = vmatpush.bf16.msra.mxu0 %v300
    %317 = vmatpush.bf16.msra.mxu0 %v299
    %318 = vmatmul.bf16.gmra.mxu0 %v305
    %v319 = vpop.f32.mrf.mxu0
    %v320 = vadd.f32 %v290, %v319
    %v321 = vpop.f32.mrf.mxu0
    %v322 = vadd.f32 %v290, %v321
    %323 = vmatmul.bf16.gmra.mxu0 %v308
    %v324 = vpop.f32.mrf.mxu0
    %v325 = vadd.f32 %v290, %v324
    %v326 = vpop.f32.mrf.mxu0
    %v327 = vadd.f32 %v290, %v326
    %328 = vdwg.mxu0
    %v329 = vld [vmem:[%s2 + $0x26] sm:$0x1]
    %v330 = vld [vmem:[%s2 + $0x27] sm:$0x1]
    %v331 = vsel %vm38, %v320, 0.0
    %v332 = vsel %vm38, %v322, 0.0
    %v333 = vadd.f32 %v331, %v332
    %v334 = vsel %vm38, %v325, 0.0
    %v335 = vadd.f32 %v333, %v334
    %vm336 = vcmask 125952
    %v337 = vsel %vm336, %v327, 0.0
    %v338 = vadd.f32 %v335, %v337
    %v339 = vrot.slane %v338, 4
    %v340 = vadd.f32 %v338, %v339
    %v341 = vrot.slane %v340, 2
    %v342 = vadd.f32 %v340, %v341
    %v343 = vrot.slane %v342, 1
    %v344 = vadd.f32 %v342, %v343
    %v345 = vrcp.pop 28.0
    %v346 = vmul.f32 28.0, %v345
    %v347 = vsub.f32 1.0, %v346
    %v348 = vmul.f32 %v345, %v347
    %v349 = vadd.f32 %v345, %v348
    %vm350 = vweird.f32 %v345
    %v351 = vsel %vm350, %v345, %v349
    %v352 = vmul.f32 %v344, %v351
    %v353 = vsub.f32 %v320, %v352
    %v354 = vsub.f32 %v322, %v352
    %v355 = vsub.f32 %v325, %v352
    %v356 = vsub.f32 %v327, %v352
    %v357 = vmul.f32 %v353, %v353
    %v358 = vmul.f32 %v354, %v354
    %v359 = vmul.f32 %v355, %v355
    %v360 = vmul.f32 %v356, %v356
    %v361 = vsel %vm38, %v357, 0.0
    %v362 = vsel %vm38, %v358, 0.0
    %v363 = vadd.f32 %v361, %v362
    %v364 = vsel %vm38, %v359, 0.0
    %v365 = vadd.f32 %v363, %v364
    %v366 = vsel %vm336, %v360, 0.0
    %v367 = vadd.f32 %v365, %v366
    %v368 = vrot.slane %v367, 4
    %v369 = vadd.f32 %v367, %v368
    %v370 = vrot.slane %v369, 2
    %v371 = vadd.f32 %v369, %v370
    %v372 = vrot.slane %v371, 1
    %v373 = vadd.f32 %v371, %v372
    %v374 = vmul.f32 %v373, %v351
    %v375 = vadd.f32 %v374, 1e-05
    %v376 = vrsqrt.pop %v375
    %v377 = vmul.f32 %v376, %v375
    %v378 = vmul.f32 %v377, %v376
    %v379 = vmul.f32 0.5, %v378
    %v380 = vsub.f32 1.5, %v379
    %v381 = vmul.f32 %v376, %v380
    %vm382 = vweird.f32 %v375
    %vm383 = vweird.f32 %v376
    %vm384 = vmor %vm382, %vm383
    %v385 = vsel %vm384, %v376, %v381
    %v386 = vmul.f32 %v353, %v385
    %v387 = vmul.f32 %v354, %v385
    %v388 = vmul.f32 %v355, %v385
    %v389 = vmul.f32 %v356, %v385
    %v390 = vperm.slane %v329, 0
    %v391 = vmul.f32 %v386, %v390
    %v392 = vmul.f32 %v387, %v390
    %v393 = vmul.f32 %v388, %v390
    %v394 = vmul.f32 %v389, %v390
    %v395 = vperm.slane %v330, 0
    %v396 = vadd.f32 %v391, %v395
    %v397 = vadd.f32 %v392, %v395
    %v398 = vadd.f32 %v393, %v395
    %v399 = vadd.f32 %v394, %v395
    %v400 = vpack.c.bf16 %v397, %v396
    %v401 = vpack.c.bf16 %v399, %v398
    %v402 = vld [vmem:[%s1 + $0x18] sm:$0xf]
    %v403 = vld [vmem:[%s1 + $0x1c] sm:$0xf]
    %v404 = vld [vmem:[%s2 + $0x28] sm:$0x1]
    %v405 = vperm.slane %v404, 0
    %v408 = vunpack.c.l.b16 %v402
    %v409 = vunpack.c.l.b16 %v403
    %v410 = vpack.c.b16 %v409, %v408
    %v413 = vsel %vm38, %v400, 0
    %v416 = vsel %vm38, %v401, 0
    %418 = vmatpush.bf16.msra.mxu0 0
    %419 = vmatpush.bf16.msra.mxu0 0
    %420 = vmatpush.bf16.msra.mxu0 0
    %421 = vmatpush.bf16.msra.mxu0 0
    %422 = vmatpush.bf16.msra.mxu0 0
    %423 = vmatpush.bf16.msra.mxu0 0
    %424 = vmatpush.bf16.msra.mxu0 0
    %425 = vmatpush.bf16.msra.mxu0 %v410
    %426 = vmatmul.bf16.gmra.mxu0 %v413
    %v427 = vpop.f32.mrf.mxu0
    %v428 = vadd.f32 %v405, %v427
    %v429 = vpop.f32.mrf.mxu0
    %v430 = vadd.f32 %v405, %v429
    %431 = vmatmul.bf16.gmra.mxu0 %v416
    %v432 = vpop.f32.mrf.mxu0
    %v433 = vadd.f32 %v405, %v432
    %v434 = vpop.f32.mrf.mxu0
    %v435 = vadd.f32 %v405, %v434
    %436 = vdwg.mxu0
    %v438 = vrot.slane %v430, 5
    %vm440 = vcmask 1040384
    %v441 = vsel %vm440, %v428, %v438
    %v443 = vrot.slane %v428, 1
    %v445 = vrot.slane %v430, 6
    %v447 = vsel %vm440, %v443, %v445
    %v448 = vrot.slane %v428, 2
    %v451 = vrot.slane %v433, 7
    %v453 = vsel %vm440, %v448, %v451
    %v454 = vrot.slane %v428, 3
    %v456 = vsel %vm440, %v454, %v433
    %v457 = vrot.slane %v428, 4
    %v459 = vrot.slane %v433, 1
    %v461 = vsel %vm440, %v457, %v459
    %v462 = vrot.slane %v428, 5
    %v464 = vrot.slane %v433, 2
    %v466 = vsel %vm440, %v462, %v464
    %v467 = vrot.slane %v428, 6
    %v469 = vrot.slane %v433, 3
    %v471 = vsel %vm440, %v467, %v469
    %v472 = vrot.slane %v428, 7
    %v474 = vrot.slane %v433, 4
    %v476 = vsel %vm440, %v472, %v474
    %v477 = vrot.slane %v433, 5
    %v479 = vsel %vm440, %v430, %v477
    %v480 = vrot.slane %v430, 1
    %v482 = vrot.slane %v433, 6
    %v484 = vsel %vm440, %v480, %v482
    %v485 = vrot.slane %v430, 2
    %v488 = vrot.slane %v435, 7
    %v490 = vsel %vm440, %v485, %v488
    %v491 = vrot.slane %v430, 3
    %v493 = vsel %vm440, %v491, %v435
    %v494 = vrot.slane %v430, 4
    %v496 = vrot.slane %v435, 1
    %v498 = vsel %vm440, %v494, %v496
    %v499 = vrot.slane %v435, 2
    %v501 = vsel %vm440, %v438, %v499
    %v502 = vld [vmem:[%s2] sm:$0xff]
    %v503 = vld [vmem:[%s2 + $0x8] sm:$0xff]
    %v504 = vld [vmem:[%s2 + $0x10] sm:$0xff]
    %v505 = vld [vmem:[%s2 + $0x18] sm:$0xff]
    %v506 = vld [vmem:[%s2 + $0x29] sm:$0x1]
    %v507 = vperm.slane %v506, 0
    %v509 = vsel %vm303, 0.0, 0
    %511 = vmatpush.msra.mxu0 0.0
    %512 = vmatpush.msra.mxu0 0.0
    %513 = vmatpush.msra.mxu0 0.0
    %514 = vmatpush.msra.mxu0 0.0
    %515 = vmatpush.msra.mxu0 0.0
    %516 = vmatpush.msra.mxu0 0.0
    %517 = vmatpush.msra.mxu0 0.0
    %518 = vmatpush.msra.mxu0 0.0
    %519 = vmatpush.msra.mxu0 0.0
    %520 = vmatpush.msra.mxu0 0.0
    %521 = vmatpush.msra.mxu0 0.0
    %522 = vmatpush.msra.mxu0 0.0
    %523 = vmatpush.msra.mxu0 %v505
    %524 = vmatpush.msra.mxu0 %v504
    %525 = vmatpush.msra.mxu0 %v503
    %526 = vmatpush.msra.mxu0 %v502
    %527 = vmatmul.f32.gmra.mxu0 %v509
    %v528 = vpop.f32.mrf.mxu0
    %v529 = vadd.f32 %v507, %v528
    %530 = vdwg.mxu0
    %v531 = vadd.f32 %v441, %v529
    %v532 = vxor.u32 %v531, 2147483648
    %v533 = vmul.f32 %v532, 1.442695
    %v534 = vpow.pop %v533
    %v535 = vadd.f32 %v534, 1.0
    %v536 = vrcp.pop %v535
    %v537 = vmul.f32 %v535, %v536
    %v538 = vsub.f32 1.0, %v537
    %v539 = vmul.f32 %v536, %v538
    %v540 = vadd.f32 %v536, %v539
    %vm541 = vweird.f32 %v535
    %vm542 = vweird.f32 %v536
    %vm543 = vmor %vm541, %vm542
    %v544 = vsel %vm543, %v536, %v540
    %v545 = vand.u32 2147483647, %v535
    %vm546 = vcmp.eq.f32.partialorder %v545, 8.507059e+37
    %v547 = vand.u32 %v535, 2147483648
    %v548 = vor.u32 1.1754944e-38, %v547
    %v549 = vsel %vm546, %v548, %v544
    %v550 = vmul.f32 1.0, %v549
    %552 = vrot.lane.b32.xlu0 %v529, 64
    %v553 = vpop.permute.xlu0 %552
    %v555 = vmul.f32 %v550, %v553
    %557 = vrot.lane.b32.xlu0 %v555, 64
    %v558 = vpop.permute.xlu0 %557
    %v560 = vadd.f32 %v441, %v558
    %v561 = vtanh.pop %v560
    %v562 = vsub.f32 1.0, %v550
    %564 = vrot.lane.b32.xlu0 %v561, 96
    %v565 = vpop.permute.xlu0 %564
    %v567 = vmul.f32 %v562, %v565
    %v568 = vmul.f32 %v550, 0.0
    %v569 = vadd.f32 %v567, %v568
    %571 = vrot.lane.b32.xlu0 %v569, 96
    %v572 = vpop.permute.xlu0 %571
    %v573 = vsel %vm303, %v572, 0
    %575 = vmatpush.msra.mxu0 0.0
    %576 = vmatpush.msra.mxu0 0.0
    %577 = vmatpush.msra.mxu0 0.0
    %578 = vmatpush.msra.mxu0 0.0
    %579 = vmatpush.msra.mxu0 0.0
    %580 = vmatpush.msra.mxu0 0.0
    %581 = vmatpush.msra.mxu0 0.0
    %582 = vmatpush.msra.mxu0 0.0
    %583 = vmatpush.msra.mxu0 0.0
    %584 = vmatpush.msra.mxu0 0.0
    %585 = vmatpush.msra.mxu0 0.0
    %586 = vmatpush.msra.mxu0 0.0
    %587 = vmatpush.msra.mxu0 %v505
    %588 = vmatpush.msra.mxu0 %v504
    %589 = vmatpush.msra.mxu0 %v503
    %590 = vmatpush.msra.mxu0 %v502
    %591 = vmatmul.f32.gmra.mxu0 %v573
    %v592 = vpop.f32.mrf.mxu0
    %v593 = vadd.f32 %v507, %v592
    %594 = vdwg.mxu0
    %v595 = vadd.f32 %v447, %v593
    %v596 = vxor.u32 %v595, 2147483648
    %v597 = vmul.f32 %v596, 1.442695
    %v598 = vpow.pop %v597
    %v599 = vadd.f32 %v598, 1.0
    %v600 = vrcp.pop %v599
    %v601 = vmul.f32 %v599, %v600
    %v602 = vsub.f32 1.0, %v601
    %v603 = vmul.f32 %v600, %v602
    %v604 = vadd.f32 %v600, %v603
    %vm605 = vweird.f32 %v599
    %vm606 = vweird.f32 %v600
    %vm607 = vmor %vm605, %vm606
    %v608 = vsel %vm607, %v600, %v604
    %v609 = vand.u32 2147483647, %v599
    %vm610 = vcmp.eq.f32.partialorder %v609, 8.507059e+37
    %v611 = vand.u32 %v599, 2147483648
    %v612 = vor.u32 1.1754944e-38, %v611
    %v613 = vsel %vm610, %v612, %v608
    %v614 = vmul.f32 1.0, %v613
    %616 = vrot.lane.b32.xlu0 %v593, 64
    %v617 = vpop.permute.xlu0 %616
    %v619 = vmul.f32 %v614, %v617
    %621 = vrot.lane.b32.xlu0 %v619, 64
    %v622 = vpop.permute.xlu0 %621
    %v624 = vadd.f32 %v447, %v622
    %v625 = vtanh.pop %v624
    %v626 = vsub.f32 1.0, %v614
    %628 = vrot.lane.b32.xlu0 %v625, 96
    %v629 = vpop.permute.xlu0 %628
    %v631 = vmul.f32 %v626, %v629
    %v632 = vmul.f32 %v614, %v569
    %v633 = vadd.f32 %v631, %v632
    %635 = vrot.lane.b32.xlu0 %v633, 96
    %v636 = vpop.permute.xlu0 %635
    %v637 = vsel %vm303, %v636, 0
    %639 = vmatpush.msra.mxu0 0.0
    %640 = vmatpush.msra.mxu0 0.0
    %641 = vmatpush.msra.mxu0 0.0
    %642 = vmatpush.msra.mxu0 0.0
    %643 = vmatpush.msra.mxu0 0.0
    %644 = vmatpush.msra.mxu0 0.0
    %645 = vmatpush.msra.mxu0 0.0
    %646 = vmatpush.msra.mxu0 0.0
    %647 = vmatpush.msra.mxu0 0.0
    %648 = vmatpush.msra.mxu0 0.0
    %649 = vmatpush.msra.mxu0 0.0
    %650 = vmatpush.msra.mxu0 0.0
    %651 = vmatpush.msra.mxu0 %v505
    %652 = vmatpush.msra.mxu0 %v504
    %653 = vmatpush.msra.mxu0 %v503
    %654 = vmatpush.msra.mxu0 %v502
    %655 = vmatmul.f32.gmra.mxu0 %v637
    %v656 = vpop.f32.mrf.mxu0
    %v657 = vadd.f32 %v507, %v656
    %658 = vdwg.mxu0
    %v659 = vadd.f32 %v453, %v657
    %v660 = vxor.u32 %v659, 2147483648
    %v661 = vmul.f32 %v660, 1.442695
    %v662 = vpow.pop %v661
    %v663 = vadd.f32 %v662, 1.0
    %v664 = vrcp.pop %v663
    %v665 = vmul.f32 %v663, %v664
    %v666 = vsub.f32 1.0, %v665
    %v667 = vmul.f32 %v664, %v666
    %v668 = vadd.f32 %v664, %v667
    %vm669 = vweird.f32 %v663
    %vm670 = vweird.f32 %v664
    %vm671 = vmor %vm669, %vm670
    %v672 = vsel %vm671, %v664, %v668
    %v673 = vand.u32 2147483647, %v663
    %vm674 = vcmp.eq.f32.partialorder %v673, 8.507059e+37
    %v675 = vand.u32 %v663, 2147483648
    %v676 = vor.u32 1.1754944e-38, %v675
    %v677 = vsel %vm674, %v676, %v672
    %v678 = vmul.f32 1.0, %v677
    %680 = vrot.lane.b32.xlu0 %v657, 64
    %v681 = vpop.permute.xlu0 %680
    %v683 = vmul.f32 %v678, %v681
    %685 = vrot.lane.b32.xlu0 %v683, 64
    %v686 = vpop.permute.xlu0 %685
    %v688 = vadd.f32 %v453, %v686
    %v689 = vtanh.pop %v688
    %v690 = vsub.f32 1.0, %v678
    %692 = vrot.lane.b32.xlu0 %v689, 96
    %v693 = vpop.permute.xlu0 %692
    %v695 = vmul.f32 %v690, %v693
    %v696 = vmul.f32 %v678, %v633
    %v697 = vadd.f32 %v695, %v696
    %699 = vrot.lane.b32.xlu0 %v697, 96
    %v700 = vpop.permute.xlu0 %699
    %v701 = vsel %vm303, %v700, 0
    %703 = vmatpush.msra.mxu0 0.0
    %704 = vmatpush.msra.mxu0 0.0
    %705 = vmatpush.msra.mxu0 0.0
    %706 = vmatpush.msra.mxu0 0.0
    %707 = vmatpush.msra.mxu0 0.0
    %708 = vmatpush.msra.mxu0 0.0
    %709 = vmatpush.msra.mxu0 0.0
    %710 = vmatpush.msra.mxu0 0.0
    %711 = vmatpush.msra.mxu0 0.0
    %712 = vmatpush.msra.mxu0 0.0
    %713 = vmatpush.msra.mxu0 0.0
    %714 = vmatpush.msra.mxu0 0.0
    %715 = vmatpush.msra.mxu0 %v505
    %716 = vmatpush.msra.mxu0 %v504
    %717 = vmatpush.msra.mxu0 %v503
    %718 = vmatpush.msra.mxu0 %v502
    %719 = vmatmul.f32.gmra.mxu0 %v701
    %v720 = vpop.f32.mrf.mxu0
    %v721 = vadd.f32 %v507, %v720
    %722 = vdwg.mxu0
    %v723 = vadd.f32 %v456, %v721
    %v724 = vxor.u32 %v723, 2147483648
    %v725 = vmul.f32 %v724, 1.442695
    %v726 = vpow.pop %v725
    %v727 = vadd.f32 %v726, 1.0
    %v728 = vrcp.pop %v727
    %v729 = vmul.f32 %v727, %v728
    %v730 = vsub.f32 1.0, %v729
    %v731 = vmul.f32 %v728, %v730
    %v732 = vadd.f32 %v728, %v731
    %vm733 = vweird.f32 %v727
    %vm734 = vweird.f32 %v728
    %vm735 = vmor %vm733, %vm734
    %v736 = vsel %vm735, %v728, %v732
    %v737 = vand.u32 2147483647, %v727
    %vm738 = vcmp.eq.f32.partialorder %v737, 8.507059e+37
    %v739 = vand.u32 %v727, 2147483648
    %v740 = vor.u32 1.1754944e-38, %v739
    %v741 = vsel %vm738, %v740, %v736
    %v742 = vmul.f32 1.0, %v741
    %744 = vrot.lane.b32.xlu0 %v721, 64
    %v745 = vpop.permute.xlu0 %744
    %v747 = vmul.f32 %v742, %v745
    %749 = vrot.lane.b32.xlu0 %v747, 64
    %v750 = vpop.permute.xlu0 %749
    %v752 = vadd.f32 %v456, %v750
    %v753 = vtanh.pop %v752
    %v754 = vsub.f32 1.0, %v742
    %756 = vrot.lane.b32.xlu0 %v753, 96
    %v757 = vpop.permute.xlu0 %756
    %v759 = vmul.f32 %v754, %v757
    %v760 = vmul.f32 %v742, %v697
    %v761 = vadd.f32 %v759, %v760
    %763 = vrot.lane.b32.xlu0 %v761, 96
    %v764 = vpop.permute.xlu0 %763
    %v765 = vsel %vm303, %v764, 0
    %767 = vmatpush.msra.mxu0 0.0
    %768 = vmatpush.msra.mxu0 0.0
    %769 = vmatpush.msra.mxu0 0.0
    %770 = vmatpush.msra.mxu0 0.0
    %771 = vmatpush.msra.mxu0 0.0
    %772 = vmatpush.msra.mxu0 0.0
    %773 = vmatpush.msra.mxu0 0.0
    %774 = vmatpush.msra.mxu0 0.0
    %775 = vmatpush.msra.mxu0 0.0
    %776 = vmatpush.msra.mxu0 0.0
    %777 = vmatpush.msra.mxu0 0.0
    %778 = vmatpush.msra.mxu0 0.0
    %779 = vmatpush.msra.mxu0 %v505
    %780 = vmatpush.msra.mxu0 %v504
    %781 = vmatpush.msra.mxu0 %v503
    %782 = vmatpush.msra.mxu0 %v502
    %783 = vmatmul.f32.gmra.mxu0 %v765
    %v784 = vpop.f32.mrf.mxu0
    %v785 = vadd.f32 %v507, %v784
    %786 = vdwg.mxu0
    %v787 = vadd.f32 %v461, %v785
    %v788 = vxor.u32 %v787, 2147483648
    %v789 = vmul.f32 %v788, 1.442695
    %v790 = vpow.pop %v789
    %v791 = vadd.f32 %v790, 1.0
    %v792 = vrcp.pop %v791
    %v793 = vmul.f32 %v791, %v792
    %v794 = vsub.f32 1.0, %v793
    %v795 = vmul.f32 %v792, %v794
    %v796 = vadd.f32 %v792, %v795
    %vm797 = vweird.f32 %v791
    %vm798 = vweird.f32 %v792
    %vm799 = vmor %vm797, %vm798
    %v800 = vsel %vm799, %v792, %v796
    %v801 = vand.u32 2147483647, %v791
    %vm802 = vcmp.eq.f32.partialorder %v801, 8.507059e+37
    %v803 = vand.u32 %v791, 2147483648
    %v804 = vor.u32 1.1754944e-38, %v803
    %v805 = vsel %vm802, %v804, %v800
    %v806 = vmul.f32 1.0, %v805
    %808 = vrot.lane.b32.xlu0 %v785, 64
    %v809 = vpop.permute.xlu0 %808
    %v811 = vmul.f32 %v806, %v809
    %813 = vrot.lane.b32.xlu0 %v811, 64
    %v814 = vpop.permute.xlu0 %813
    %v816 = vadd.f32 %v461, %v814
    %v817 = vtanh.pop %v816
    %v818 = vsub.f32 1.0, %v806
    %820 = vrot.lane.b32.xlu0 %v817, 96
    %v821 = vpop.permute.xlu0 %820
    %v823 = vmul.f32 %v818, %v821
    %v824 = vmul.f32 %v806, %v761
    %v825 = vadd.f32 %v823, %v824
    %827 = vrot.lane.b32.xlu0 %v825, 96
    %v828 = vpop.permute.xlu0 %827
    %v829 = vsel %vm303, %v828, 0
    %831 = vmatpush.msra.mxu0 0.0
    %832 = vmatpush.msra.mxu0 0.0
    %833 = vmatpush.msra.mxu0 0.0
    %834 = vmatpush.msra.mxu0 0.0
    %835 = vmatpush.msra.mxu0 0.0
    %836 = vmatpush.msra.mxu0 0.0
    %837 = vmatpush.msra.mxu0 0.0
    %838 = vmatpush.msra.mxu0 0.0
    %839 = vmatpush.msra.mxu0 0.0
    %840 = vmatpush.msra.mxu0 0.0
    %841 = vmatpush.msra.mxu0 0.0
    %842 = vmatpush.msra.mxu0 0.0
    %843 = vmatpush.msra.mxu0 %v505
    %844 = vmatpush.msra.mxu0 %v504
    %845 = vmatpush.msra.mxu0 %v503
    %846 = vmatpush.msra.mxu0 %v502
    %847 = vmatmul.f32.gmra.mxu0 %v829
    %v848 = vpop.f32.mrf.mxu0
    %v849 = vadd.f32 %v507, %v848
    %850 = vdwg.mxu0
    %v851 = vadd.f32 %v466, %v849
    %v852 = vxor.u32 %v851, 2147483648
    %v853 = vmul.f32 %v852, 1.442695
    %v854 = vpow.pop %v853
    %v855 = vadd.f32 %v854, 1.0
    %v856 = vrcp.pop %v855
    %v857 = vmul.f32 %v855, %v856
    %v858 = vsub.f32 1.0, %v857
    %v859 = vmul.f32 %v856, %v858
    %v860 = vadd.f32 %v856, %v859
    %vm861 = vweird.f32 %v855
    %vm862 = vweird.f32 %v856
    %vm863 = vmor %vm861, %vm862
    %v864 = vsel %vm863, %v856, %v860
    %v865 = vand.u32 2147483647, %v855
    %vm866 = vcmp.eq.f32.partialorder %v865, 8.507059e+37
    %v867 = vand.u32 %v855, 2147483648
    %v868 = vor.u32 1.1754944e-38, %v867
    %v869 = vsel %vm866, %v868, %v864
    %v870 = vmul.f32 1.0, %v869
    %872 = vrot.lane.b32.xlu0 %v849, 64
    %v873 = vpop.permute.xlu0 %872
    %v875 = vmul.f32 %v870, %v873
    %877 = vrot.lane.b32.xlu0 %v875, 64
    %v878 = vpop.permute.xlu0 %877
    %v880 = vadd.f32 %v466, %v878
    %v881 = vtanh.pop %v880
    %v882 = vsub.f32 1.0, %v870
    %884 = vrot.lane.b32.xlu0 %v881, 96
    %v885 = vpop.permute.xlu0 %884
    %v887 = vmul.f32 %v882, %v885
    %v888 = vmul.f32 %v870, %v825
    %v889 = vadd.f32 %v887, %v888
    %891 = vrot.lane.b32.xlu0 %v889, 96
    %v892 = vpop.permute.xlu0 %891
    %v893 = vsel %vm303, %v892, 0
    %895 = vmatpush.msra.mxu0 0.0
    %896 = vmatpush.msra.mxu0 0.0
    %897 = vmatpush.msra.mxu0 0.0
    %898 = vmatpush.msra.mxu0 0.0
    %899 = vmatpush.msra.mxu0 0.0
    %900 = vmatpush.msra.mxu0 0.0
    %901 = vmatpush.msra.mxu0 0.0
    %902 = vmatpush.msra.mxu0 0.0
    %903 = vmatpush.msra.mxu0 0.0
    %904 = vmatpush.msra.mxu0 0.0
    %905 = vmatpush.msra.mxu0 0.0
    %906 = vmatpush.msra.mxu0 0.0
    %907 = vmatpush.msra.mxu0 %v505
    %908 = vmatpush.msra.mxu0 %v504
    %909 = vmatpush.msra.mxu0 %v503
    %910 = vmatpush.msra.mxu0 %v502
    %911 = vmatmul.f32.gmra.mxu0 %v893
    %v912 = vpop.f32.mrf.mxu0
    %v913 = vadd.f32 %v507, %v912
    %914 = vdwg.mxu0
    %v915 = vadd.f32 %v471, %v913
    %v916 = vxor.u32 %v915, 2147483648
    %v917 = vmul.f32 %v916, 1.442695
    %v918 = vpow.pop %v917
    %v919 = vadd.f32 %v918, 1.0
    %v920 = vrcp.pop %v919
    %v921 = vmul.f32 %v919, %v920
    %v922 = vsub.f32 1.0, %v921
    %v923 = vmul.f32 %v920, %v922
    %v924 = vadd.f32 %v920, %v923
    %vm925 = vweird.f32 %v919
    %vm926 = vweird.f32 %v920
    %vm927 = vmor %vm925, %vm926
    %v928 = vsel %vm927, %v920, %v924
    %v929 = vand.u32 2147483647, %v919
    %vm930 = vcmp.eq.f32.partialorder %v929, 8.507059e+37
    %v931 = vand.u32 %v919, 2147483648
    %v932 = vor.u32 1.1754944e-38, %v931
    %v933 = vsel %vm930, %v932, %v928
    %v934 = vmul.f32 1.0, %v933
    %936 = vrot.lane.b32.xlu0 %v913, 64
    %v937 = vpop.permute.xlu0 %936
    %v939 = vmul.f32 %v934, %v937
    %941 = vrot.lane.b32.xlu0 %v939, 64
    %v942 = vpop.permute.xlu0 %941
    %v944 = vadd.f32 %v471, %v942
    %v945 = vtanh.pop %v944
    %v946 = vsub.f32 1.0, %v934
    %948 = vrot.lane.b32.xlu0 %v945, 96
    %v949 = vpop.permute.xlu0 %948
    %v951 = vmul.f32 %v946, %v949
    %v952 = vmul.f32 %v934, %v889
    %v953 = vadd.f32 %v951, %v952
    %955 = vrot.lane.b32.xlu0 %v953, 96
    %v956 = vpop.permute.xlu0 %955
    %v957 = vsel %vm303, %v956, 0
    %959 = vmatpush.msra.mxu0 0.0
    %960 = vmatpush.msra.mxu0 0.0
    %961 = vmatpush.msra.mxu0 0.0
    %962 = vmatpush.msra.mxu0 0.0
    %963 = vmatpush.msra.mxu0 0.0
    %964 = vmatpush.msra.mxu0 0.0
    %965 = vmatpush.msra.mxu0 0.0
    %966 = vmatpush.msra.mxu0 0.0
    %967 = vmatpush.msra.mxu0 0.0
    %968 = vmatpush.msra.mxu0 0.0
    %969 = vmatpush.msra.mxu0 0.0
    %970 = vmatpush.msra.mxu0 0.0
    %971 = vmatpush.msra.mxu0 %v505
    %972 = vmatpush.msra.mxu0 %v504
    %973 = vmatpush.msra.mxu0 %v503
    %974 = vmatpush.msra.mxu0 %v502
    %975 = vmatmul.f32.gmra.mxu0 %v957
    %v976 = vpop.f32.mrf.mxu0
    %v977 = vadd.f32 %v507, %v976
    %978 = vdwg.mxu0
    %v979 = vadd.f32 %v476, %v977
    %v980 = vxor.u32 %v979, 2147483648
    %v981 = vmul.f32 %v980, 1.442695
    %v982 = vpow.pop %v981
    %v983 = vadd.f32 %v982, 1.0
    %v984 = vrcp.pop %v983
    %v985 = vmul.f32 %v983, %v984
    %v986 = vsub.f32 1.0, %v985
    %v987 = vmul.f32 %v984, %v986
    %v988 = vadd.f32 %v984, %v987
    %vm989 = vweird.f32 %v983
    %vm990 = vweird.f32 %v984
    %vm991 = vmor %vm989, %vm990
    %v992 = vsel %vm991, %v984, %v988
    %v993 = vand.u32 2147483647, %v983
    %vm994 = vcmp.eq.f32.partialorder %v993, 8.507059e+37
    %v995 = vand.u32 %v983, 2147483648
    %v996 = vor.u32 1.1754944e-38, %v995
    %v997 = vsel %vm994, %v996, %v992
    %v998 = vmul.f32 1.0, %v997
    %1000 = vrot.lane.b32.xlu0 %v977, 64
    %v1001 = vpop.permute.xlu0 %1000
    %v1003 = vmul.f32 %v998, %v1001
    %1005 = vrot.lane.b32.xlu0 %v1003, 64
    %v1006 = vpop.permute.xlu0 %1005
    %v1008 = vadd.f32 %v476, %v1006
    %v1009 = vtanh.pop %v1008
    %v1010 = vsub.f32 1.0, %v998
    %1012 = vrot.lane.b32.xlu0 %v1009, 96
    %v1013 = vpop.permute.xlu0 %1012
    %v1015 = vmul.f32 %v1010, %v1013
    %v1016 = vmul.f32 %v998, %v953
    %v1017 = vadd.f32 %v1015, %v1016
    %1019 = vrot.lane.b32.xlu0 %v1017, 96
    %v1020 = vpop.permute.xlu0 %1019
    %v1021 = vsel %vm303, %v1020, 0
    %1023 = vmatpush.msra.mxu0 0.0
    %1024 = vmatpush.msra.mxu0 0.0
    %1025 = vmatpush.msra.mxu0 0.0
    %1026 = vmatpush.msra.mxu0 0.0
    %1027 = vmatpush.msra.mxu0 0.0
    %1028 = vmatpush.msra.mxu0 0.0
    %1029 = vmatpush.msra.mxu0 0.0
    %1030 = vmatpush.msra.mxu0 0.0
    %1031 = vmatpush.msra.mxu0 0.0
    %1032 = vmatpush.msra.mxu0 0.0
    %1033 = vmatpush.msra.mxu0 0.0
    %1034 = vmatpush.msra.mxu0 0.0
    %1035 = vmatpush.msra.mxu0 %v505
    %1036 = vmatpush.msra.mxu0 %v504
    %1037 = vmatpush.msra.mxu0 %v503
    %1038 = vmatpush.msra.mxu0 %v502
    %1039 = vmatmul.f32.gmra.mxu0 %v1021
    %v1040 = vpop.f32.mrf.mxu0
    %v1041 = vadd.f32 %v507, %v1040
    %1042 = vdwg.mxu0
    %v1043 = vadd.f32 %v479, %v1041
    %v1044 = vxor.u32 %v1043, 2147483648
    %v1045 = vmul.f32 %v1044, 1.442695
    %v1046 = vpow.pop %v1045
    %v1047 = vadd.f32 %v1046, 1.0
    %v1048 = vrcp.pop %v1047
    %v1049 = vmul.f32 %v1047, %v1048
    %v1050 = vsub.f32 1.0, %v1049
    %v1051 = vmul.f32 %v1048, %v1050
    %v1052 = vadd.f32 %v1048, %v1051
    %vm1053 = vweird.f32 %v1047
    %vm1054 = vweird.f32 %v1048
    %vm1055 = vmor %vm1053, %vm1054
    %v1056 = vsel %vm1055, %v1048, %v1052
    %v1057 = vand.u32 2147483647, %v1047
    %vm1058 = vcmp.eq.f32.partialorder %v1057, 8.507059e+37
    %v1059 = vand.u32 %v1047, 2147483648
    %v1060 = vor.u32 1.1754944e-38, %v1059
    %v1061 = vsel %vm1058, %v1060, %v1056
    %v1062 = vmul.f32 1.0, %v1061
    %1064 = vrot.lane.b32.xlu0 %v1041, 64
    %v1065 = vpop.permute.xlu0 %1064
    %v1067 = vmul.f32 %v1062, %v1065
    %1069 = vrot.lane.b32.xlu0 %v1067, 64
    %v1070 = vpop.permute.xlu0 %1069
    %v1072 = vadd.f32 %v479, %v1070
    %v1073 = vtanh.pop %v1072
    %v1074 = vsub.f32 1.0, %v1062
    %1076 = vrot.lane.b32.xlu0 %v1073, 96
    %v1077 = vpop.permute.xlu0 %1076
    %v1079 = vmul.f32 %v1074, %v1077
    %v1080 = vmul.f32 %v1062, %v1017
    %v1081 = vadd.f32 %v1079, %v1080
    %1083 = vrot.lane.b32.xlu0 %v1081, 96
    %v1084 = vpop.permute.xlu0 %1083
    %v1085 = vsel %vm303, %v1084, 0
    %1087 = vmatpush.msra.mxu0 0.0
    %1088 = vmatpush.msra.mxu0 0.0
    %1089 = vmatpush.msra.mxu0 0.0
    %1090 = vmatpush.msra.mxu0 0.0
    %1091 = vmatpush.msra.mxu0 0.0
    %1092 = vmatpush.msra.mxu0 0.0
    %1093 = vmatpush.msra.mxu0 0.0
    %1094 = vmatpush.msra.mxu0 0.0
    %1095 = vmatpush.msra.mxu0 0.0
    %1096 = vmatpush.msra.mxu0 0.0
    %1097 = vmatpush.msra.mxu0 0.0
    %1098 = vmatpush.msra.mxu0 0.0
    %1099 = vmatpush.msra.mxu0 %v505
    %1100 = vmatpush.msra.mxu0 %v504
    %1101 = vmatpush.msra.mxu0 %v503
    %1102 = vmatpush.msra.mxu0 %v502
    %1103 = vmatmul.f32.gmra.mxu0 %v1085
    %v1104 = vpop.f32.mrf.mxu0
    %v1105 = vadd.f32 %v507, %v1104
    %1106 = vdwg.mxu0
    %v1107 = vadd.f32 %v484, %v1105
    %v1108 = vxor.u32 %v1107, 2147483648
    %v1109 = vmul.f32 %v1108, 1.442695
    %v1110 = vpow.pop %v1109
    %v1111 = vadd.f32 %v1110, 1.0
    %v1112 = vrcp.pop %v1111
    %v1113 = vmul.f32 %v1111, %v1112
    %v1114 = vsub.f32 1.0, %v1113
    %v1115 = vmul.f32 %v1112, %v1114
    %v1116 = vadd.f32 %v1112, %v1115
    %vm1117 = vweird.f32 %v1111
    %vm1118 = vweird.f32 %v1112
    %vm1119 = vmor %vm1117, %vm1118
    %v1120 = vsel %vm1119, %v1112, %v1116
    %v1121 = vand.u32 2147483647, %v1111
    %vm1122 = vcmp.eq.f32.partialorder %v1121, 8.507059e+37
    %v1123 = vand.u32 %v1111, 2147483648
    %v1124 = vor.u32 1.1754944e-38, %v1123
    %v1125 = vsel %vm1122, %v1124, %v1120
    %v1126 = vmul.f32 1.0, %v1125
    %1128 = vrot.lane.b32.xlu0 %v1105, 64
    %v1129 = vpop.permute.xlu0 %1128
    %v1131 = vmul.f32 %v1126, %v1129
    %1133 = vrot.lane.b32.xlu0 %v1131, 64
    %v1134 = vpop.permute.xlu0 %1133
    %v1136 = vadd.f32 %v484, %v1134
    %v1137 = vtanh.pop %v1136
    %v1138 = vsub.f32 1.0, %v1126
    %1140 = vrot.lane.b32.xlu0 %v1137, 96
    %v1141 = vpop.permute.xlu0 %1140
    %v1143 = vmul.f32 %v1138, %v1141
    %v1144 = vmul.f32 %v1126, %v1081
    %v1145 = vadd.f32 %v1143, %v1144
    %1147 = vrot.lane.b32.xlu0 %v1145, 96
    %v1148 = vpop.permute.xlu0 %1147
    %v1149 = vsel %vm303, %v1148, 0
    %1151 = vmatpush.msra.mxu0 0.0
    %1152 = vmatpush.msra.mxu0 0.0
    %1153 = vmatpush.msra.mxu0 0.0
    %1154 = vmatpush.msra.mxu0 0.0
    %1155 = vmatpush.msra.mxu0 0.0
    %1156 = vmatpush.msra.mxu0 0.0
    %1157 = vmatpush.msra.mxu0 0.0
    %1158 = vmatpush.msra.mxu0 0.0
    %1159 = vmatpush.msra.mxu0 0.0
    %1160 = vmatpush.msra.mxu0 0.0
    %1161 = vmatpush.msra.mxu0 0.0
    %1162 = vmatpush.msra.mxu0 0.0
    %1163 = vmatpush.msra.mxu0 %v505
    %1164 = vmatpush.msra.mxu0 %v504
    %1165 = vmatpush.msra.mxu0 %v503
    %1166 = vmatpush.msra.mxu0 %v502
    %1167 = vmatmul.f32.gmra.mxu0 %v1149
    %v1168 = vpop.f32.mrf.mxu0
    %v1169 = vadd.f32 %v507, %v1168
    %1170 = vdwg.mxu0
    %v1171 = vadd.f32 %v490, %v1169
    %v1172 = vxor.u32 %v1171, 2147483648
    %v1173 = vmul.f32 %v1172, 1.442695
    %v1174 = vpow.pop %v1173
    %v1175 = vadd.f32 %v1174, 1.0
    %v1176 = vrcp.pop %v1175
    %v1177 = vmul.f32 %v1175, %v1176
    %v1178 = vsub.f32 1.0, %v1177
    %v1179 = vmul.f32 %v1176, %v1178
    %v1180 = vadd.f32 %v1176, %v1179
    %vm1181 = vweird.f32 %v1175
    %vm1182 = vweird.f32 %v1176
    %vm1183 = vmor %vm1181, %vm1182
    %v1184 = vsel %vm1183, %v1176, %v1180
    %v1185 = vand.u32 2147483647, %v1175
    %vm1186 = vcmp.eq.f32.partialorder %v1185, 8.507059e+37
    %v1187 = vand.u32 %v1175, 2147483648
    %v1188 = vor.u32 1.1754944e-38, %v1187
    %v1189 = vsel %vm1186, %v1188, %v1184
    %v1190 = vmul.f32 1.0, %v1189
    %1192 = vrot.lane.b32.xlu0 %v1169, 64
    %v1193 = vpop.permute.xlu0 %1192
    %v1195 = vmul.f32 %v1190, %v1193
    %1197 = vrot.lane.b32.xlu0 %v1195, 64
    %v1198 = vpop.permute.xlu0 %1197
    %v1200 = vadd.f32 %v490, %v1198
    %v1201 = vtanh.pop %v1200
    %v1202 = vsub.f32 1.0, %v1190
    %1204 = vrot.lane.b32.xlu0 %v1201, 96
    %v1205 = vpop.permute.xlu0 %1204
    %v1207 = vmul.f32 %v1202, %v1205
    %v1208 = vmul.f32 %v1190, %v1145
    %v1209 = vadd.f32 %v1207, %v1208
    %v1210 = vlaneseq
    %v1211 = vshrl.u32 %v1210, 7
    %vm1212 = vcmp.lt.s32.totalorder %v1211, 1
    %v1213 = vsel %vm1212, 1, 0
    %v1214 = vcvt.s32.f32 %v1213
    %v1215 = vmul.f32 %v1209, %v1214
    %1217 = vrot.lane.b32.xlu0 %v1209, 96
    %v1218 = vpop.permute.xlu0 %1217
    %v1219 = vsel %vm303, %v1218, 0
    %1221 = vmatpush.msra.mxu0 0.0
    %1222 = vmatpush.msra.mxu0 0.0
    %1223 = vmatpush.msra.mxu0 0.0
    %1224 = vmatpush.msra.mxu0 0.0
    %1225 = vmatpush.msra.mxu0 0.0
    %1226 = vmatpush.msra.mxu0 0.0
    %1227 = vmatpush.msra.mxu0 0.0
    %1228 = vmatpush.msra.mxu0 0.0
    %1229 = vmatpush.msra.mxu0 0.0
    %1230 = vmatpush.msra.mxu0 0.0
    %1231 = vmatpush.msra.mxu0 0.0
    %1232 = vmatpush.msra.mxu0 0.0
    %1233 = vmatpush.msra.mxu0 %v505
    %1234 = vmatpush.msra.mxu0 %v504
    %1235 = vmatpush.msra.mxu0 %v503
    %1236 = vmatpush.msra.mxu0 %v502
    %1237 = vmatmul.f32.gmra.mxu0 %v1219
    %v1238 = vpop.f32.mrf.mxu0
    %v1239 = vadd.f32 %v507, %v1238
    %1240 = vdwg.mxu0
    %v1241 = vadd.f32 %v493, %v1239
    %v1242 = vxor.u32 %v1241, 2147483648
    %v1243 = vmul.f32 %v1242, 1.442695
    %v1244 = vpow.pop %v1243
    %v1245 = vadd.f32 %v1244, 1.0
    %v1246 = vrcp.pop %v1245
    %v1247 = vmul.f32 %v1245, %v1246
    %v1248 = vsub.f32 1.0, %v1247
    %v1249 = vmul.f32 %v1246, %v1248
    %v1250 = vadd.f32 %v1246, %v1249
    %vm1251 = vweird.f32 %v1245
    %vm1252 = vweird.f32 %v1246
    %vm1253 = vmor %vm1251, %vm1252
    %v1254 = vsel %vm1253, %v1246, %v1250
    %v1255 = vand.u32 2147483647, %v1245
    %vm1256 = vcmp.eq.f32.partialorder %v1255, 8.507059e+37
    %v1257 = vand.u32 %v1245, 2147483648
    %v1258 = vor.u32 1.1754944e-38, %v1257
    %v1259 = vsel %vm1256, %v1258, %v1254
    %v1260 = vmul.f32 1.0, %v1259
    %1262 = vrot.lane.b32.xlu0 %v1239, 64
    %v1263 = vpop.permute.xlu0 %1262
    %v1265 = vmul.f32 %v1260, %v1263
    %1267 = vrot.lane.b32.xlu0 %v1265, 64
    %v1268 = vpop.permute.xlu0 %1267
    %v1270 = vadd.f32 %v493, %v1268
    %v1271 = vtanh.pop %v1270
    %v1272 = vsub.f32 1.0, %v1260
    %1274 = vrot.lane.b32.xlu0 %v1271, 96
    %v1275 = vpop.permute.xlu0 %1274
    %v1277 = vmul.f32 %v1272, %v1275
    %v1278 = vmul.f32 %v1260, %v1209
    %v1279 = vadd.f32 %v1277, %v1278
    %v1280 = vmul.f32 %v1279, %v1214
    %1282 = vrot.lane.b32.xlu0 %v1279, 96
    %v1283 = vpop.permute.xlu0 %1282
    %v1284 = vsel %vm303, %v1283, 0
    %1286 = vmatpush.msra.mxu0 0.0
    %1287 = vmatpush.msra.mxu0 0.0
    %1288 = vmatpush.msra.mxu0 0.0
    %1289 = vmatpush.msra.mxu0 0.0
    %1290 = vmatpush.msra.mxu0 0.0
    %1291 = vmatpush.msra.mxu0 0.0
    %1292 = vmatpush.msra.mxu0 0.0
    %1293 = vmatpush.msra.mxu0 0.0
    %1294 = vmatpush.msra.mxu0 0.0
    %1295 = vmatpush.msra.mxu0 0.0
    %1296 = vmatpush.msra.mxu0 0.0
    %1297 = vmatpush.msra.mxu0 0.0
    %1298 = vmatpush.msra.mxu0 %v505
    %1299 = vmatpush.msra.mxu0 %v504
    %1300 = vmatpush.msra.mxu0 %v503
    %1301 = vmatpush.msra.mxu0 %v502
    %1302 = vmatmul.f32.gmra.mxu0 %v1284
    %v1303 = vpop.f32.mrf.mxu0
    %v1304 = vadd.f32 %v507, %v1303
    %1305 = vdwg.mxu0
    %v1306 = vadd.f32 %v498, %v1304
    %v1307 = vxor.u32 %v1306, 2147483648
    %v1308 = vmul.f32 %v1307, 1.442695
    %v1309 = vpow.pop %v1308
    %v1310 = vadd.f32 %v1309, 1.0
    %v1311 = vrcp.pop %v1310
    %v1312 = vmul.f32 %v1310, %v1311
    %v1313 = vsub.f32 1.0, %v1312
    %v1314 = vmul.f32 %v1311, %v1313
    %v1315 = vadd.f32 %v1311, %v1314
    %vm1316 = vweird.f32 %v1310
    %vm1317 = vweird.f32 %v1311
    %vm1318 = vmor %vm1316, %vm1317
    %v1319 = vsel %vm1318, %v1311, %v1315
    %v1320 = vand.u32 2147483647, %v1310
    %vm1321 = vcmp.eq.f32.partialorder %v1320, 8.507059e+37
    %v1322 = vand.u32 %v1310, 2147483648
    %v1323 = vor.u32 1.1754944e-38, %v1322
    %v1324 = vsel %vm1321, %v1323, %v1319
    %v1325 = vmul.f32 1.0, %v1324
    %1327 = vrot.lane.b32.xlu0 %v1304, 64
    %v1328 = vpop.permute.xlu0 %1327
    %v1330 = vmul.f32 %v1325, %v1328
    %1332 = vrot.lane.b32.xlu0 %v1330, 64
    %v1333 = vpop.permute.xlu0 %1332
    %v1335 = vadd.f32 %v498, %v1333
    %v1336 = vtanh.pop %v1335
    %v1337 = vsub.f32 1.0, %v1325
    %1339 = vrot.lane.b32.xlu0 %v1336, 96
    %v1340 = vpop.permute.xlu0 %1339
    %v1342 = vmul.f32 %v1337, %v1340
    %v1343 = vmul.f32 %v1325, %v1279
    %v1344 = vadd.f32 %v1342, %v1343
    %v1345 = vmul.f32 %v1344, %v1214
    %1347 = vrot.lane.b32.xlu0 %v1344, 96
    %v1348 = vpop.permute.xlu0 %1347
    %v1349 = vsel %vm303, %v1348, 0
    %1351 = vmatpush.msra.mxu0 0.0
    %1352 = vmatpush.msra.mxu0 0.0
    %1353 = vmatpush.msra.mxu0 0.0
    %1354 = vmatpush.msra.mxu0 0.0
    %1355 = vmatpush.msra.mxu0 0.0
    %1356 = vmatpush.msra.mxu0 0.0
    %1357 = vmatpush.msra.mxu0 0.0
    %1358 = vmatpush.msra.mxu0 0.0
    %1359 = vmatpush.msra.mxu0 0.0
    %1360 = vmatpush.msra.mxu0 0.0
    %1361 = vmatpush.msra.mxu0 0.0
    %1362 = vmatpush.msra.mxu0 0.0
    %1363 = vmatpush.msra.mxu0 %v505
    %1364 = vmatpush.msra.mxu0 %v504
    %1365 = vmatpush.msra.mxu0 %v503
    %1366 = vmatpush.msra.mxu0 %v502
    %1367 = vmatmul.f32.gmra.mxu0 %v1349
    %v1368 = vpop.f32.mrf.mxu0
    %v1369 = vadd.f32 %v507, %v1368
    %1370 = vdwg.mxu0
    %v1371 = vadd.f32 %v501, %v1369
    %v1372 = vxor.u32 %v1371, 2147483648
    %v1373 = vmul.f32 %v1372, 1.442695
    %v1374 = vpow.pop %v1373
    %v1375 = vadd.f32 %v1374, 1.0
    %v1376 = vrcp.pop %v1375
    %v1377 = vmul.f32 %v1375, %v1376
    %v1378 = vsub.f32 1.0, %v1377
    %v1379 = vmul.f32 %v1376, %v1378
    %v1380 = vadd.f32 %v1376, %v1379
    %vm1381 = vweird.f32 %v1375
    %vm1382 = vweird.f32 %v1376
    %vm1383 = vmor %vm1381, %vm1382
    %v1384 = vsel %vm1383, %v1376, %v1380
    %v1385 = vand.u32 2147483647, %v1375
    %vm1386 = vcmp.eq.f32.partialorder %v1385, 8.507059e+37
    %v1387 = vand.u32 %v1375, 2147483648
    %v1388 = vor.u32 1.1754944e-38, %v1387
    %v1389 = vsel %vm1386, %v1388, %v1384
    %v1390 = vmul.f32 1.0, %v1389
    %1392 = vrot.lane.b32.xlu0 %v1369, 64
    %v1393 = vpop.permute.xlu0 %1392
    %v1395 = vmul.f32 %v1390, %v1393
    %1397 = vrot.lane.b32.xlu0 %v1395, 64
    %v1398 = vpop.permute.xlu0 %1397
    %v1400 = vadd.f32 %v501, %v1398
    %v1401 = vtanh.pop %v1400
    %v1402 = vsub.f32 1.0, %v1390
    %1404 = vrot.lane.b32.xlu0 %v1401, 96
    %v1405 = vpop.permute.xlu0 %1404
    %v1407 = vmul.f32 %v1402, %v1405
    %v1408 = vmul.f32 %v1390, %v1344
    %v1409 = vadd.f32 %v1407, %v1408
    %v1410 = vmul.f32 %v1409, %v1214
    %v1411 = vrot.slane %v633, 6
    %v1413 = vrot.slane %v697, 4
    %v1415 = vrot.slane %v761, 2
    %v1417 = vrot.slane %v889, 6
    %v1419 = vrot.slane %v953, 4
    %v1421 = vrot.slane %v1017, 2
    %v1423 = vrot.slane %v1145, 6
    %v1426 = vrot.slane %v1215, 4
    %v1429 = vrot.slane %v1280, 2
    %v1432 = vrot.slane %v1410, 6
    %vm1434 = vcmask 1041408
    %v1435 = vsel %vm1434, %v569, %v1411
    %vm1436 = vcmask 1043456
    %v1437 = vsel %vm1436, %v1435, %v1413
    %v1438 = vsel %vm281, %v1437, %v1415
    %v1439 = vsel %vm1434, %v825, %v1417
    %v1440 = vsel %vm1436, %v1439, %v1419
    %v1441 = vsel %vm281, %v1440, %v1421
    %v1442 = vsel %vm1434, %v1081, %v1423
    %v1443 = vsel %vm1436, %v1442, %v1426
    %v1444 = vsel %vm281, %v1443, %v1429
    %v1445 = vsel %vm1434, %v1345, %v1432
    %v1446 = vld [vmem:[%s2 + $0x20] sm:$0x3]
    %v1447 = vpack.c.bf16 %v1441, %v1438
    %v1448 = vpack.c.bf16 %v1445, %v1444
    %v1449 = vld [vmem:[%s1 + $0x20] sm:$0xf]
    %v1450 = vld [vmem:[%s1 + $0x24] sm:$0xf]
    %v1451 = vld [vmem:[%s1 + $0x28] sm:$0xf]
    %v1452 = vld [vmem:[%s1 + $0x2c] sm:$0xf]
    %v1453 = vld [vmem:[%s2 + $0x2a] sm:$0x1]
    %v1454 = vperm.slane %v1453, 0
    %1457 = vrot.lane.b32.xlu0 %v1447, 96
    %v1458 = vpop.permute.xlu0 %1457
    %1459 = vrot.lane.b32.xlu0 %v1448, 96
    %v1460 = vpop.permute.xlu0 %1459
    %v1465 = vunpack.c.l.b16 %v1449
    %v1466 = vunpack.c.l.b16 %v1450
    %v1467 = vunpack.c.l.b16 %v1451
    %v1468 = vunpack.c.l.b16 %v1452
    %v1469 = vpack.c.b16 %v1466, %v1465
    %v1470 = vpack.c.b16 %v1468, %v1467
    %v1474 = vsel %vm303, %v1458, 0
    %v1477 = vsel %vm303, %v1460, 0
    %1479 = vmatpush.bf16.msra.mxu0 0
    %1480 = vmatpush.bf16.msra.mxu0 0
    %1481 = vmatpush.bf16.msra.mxu0 0
    %1482 = vmatpush.bf16.msra.mxu0 0
    %1483 = vmatpush.bf16.msra.mxu0 0
    %1484 = vmatpush.bf16.msra.mxu0 0
    %1485 = vmatpush.bf16.msra.mxu0 %v1470
    %1486 = vmatpush.bf16.msra.mxu0 %v1469
    %1487 = vmatmul.bf16.gmra.mxu0 %v1474
    %v1488 = vpop.f32.mrf.mxu0
    %v1489 = vadd.f32 %v1454, %v1488
    %v1490 = vpop.f32.mrf.mxu0
    %v1491 = vadd.f32 %v1454, %v1490
    %1492 = vmatmul.bf16.gmra.mxu0 %v1477
    %v1493 = vpop.f32.mrf.mxu0
    %v1494 = vadd.f32 %v1454, %v1493
    %v1495 = vpop.f32.mrf.mxu0
    %v1496 = vadd.f32 %v1454, %v1495
    %1497 = vdwg.mxu0
    %v1498 = vtanh.pop %v1489
    %v1499 = vtanh.pop %v1491
    %v1500 = vtanh.pop %v1494
    %v1501 = vtanh.pop %v1496
    %v1502 = vpack.c.bf16 %v1499, %v1498
    %v1503 = vpack.c.bf16 %v1501, %v1500
    %v1504 = vld [vmem:[%s1 + $0x30] sm:$0xf]
    %v1505 = vld [vmem:[%s1 + $0x34] sm:$0xf]
    %v1506 = vld [vmem:[%s1 + $0x38] sm:$0xf]
    %v1507 = vld [vmem:[%s1 + $0x3c] sm:$0xf]
    %v1508 = vld [vmem:[%s2 + $0x2b] sm:$0x1]
    %v1509 = vperm.slane %v1508, 0
    %v1514 = vunpack.c.l.b16 %v1504
    %v1515 = vunpack.c.l.b16 %v1505
    %v1516 = vunpack.c.l.b16 %v1506
    %v1517 = vunpack.c.l.b16 %v1507
    %v1518 = vpack.c.b16 %v1515, %v1514
    %v1519 = vpack.c.b16 %v1517, %v1516
    %v1523 = vsel %vm303, %v1502, 0
    %v1526 = vsel %vm303, %v1503, 0
    %1528 = vmatpush.bf16.msra.mxu0 0
    %1529 = vmatpush.bf16.msra.mxu0 0
    %1530 = vmatpush.bf16.msra.mxu0 0
    %1531 = vmatpush.bf16.msra.mxu0 0
    %1532 = vmatpush.bf16.msra.mxu0 0
    %1533 = vmatpush.bf16.msra.mxu0 0
    %1534 = vmatpush.bf16.msra.mxu0 %v1519
    %1535 = vmatpush.bf16.msra.mxu0 %v1518
    %1536 = vmatmul.bf16.gmra.mxu0 %v1523
    %v1537 = vpop.f32.mrf.mxu0
    %v1538 = vadd.f32 %v1509, %v1537
    %v1539 = vpop.f32.mrf.mxu0
    %v1540 = vadd.f32 %v1509, %v1539
    %1541 = vmatmul.bf16.gmra.mxu0 %v1526
    %v1542 = vpop.f32.mrf.mxu0
    %v1543 = vadd.f32 %v1509, %v1542
    %v1544 = vpop.f32.mrf.mxu0
    %v1545 = vadd.f32 %v1509, %v1544
    %1546 = vdwg.mxu0
    %vm1547 = vcmask 523264
    %v1548 = vsel %vm1547, %v1538, -inf
    %v1549 = vsel %vm1547, %v1540, -inf
    %v1550 = vsel %vm1547, %v1543, -inf
    %vm1551 = vcmask 519168
    %v1552 = vsel %vm1551, %v1545, -inf
    %v1553 = vmax.f32 %v1548, %v1549
    %v1554 = vmax.f32 %v1550, %v1552
    %v1555 = vmax.f32 %v1553, %v1554
    %v1556 = vrot.slane %v1555, 4
    %v1557 = vmax.f32 %v1555, %v1556
    %v1558 = vrot.slane %v1557, 2
    %v1559 = vmax.f32 %v1557, %v1558
    %v1560 = vrot.slane %v1559, 1
    %v1561 = vmax.f32 %v1559, %v1560
    %v1562 = vsub.f32 %v1538, %v1561
    %v1563 = vsub.f32 %v1540, %v1561
    %v1564 = vsub.f32 %v1543, %v1561
    %v1565 = vsub.f32 %v1545, %v1561
    %v1566 = vmul.f32 %v1562, 1.442695
    %v1567 = vpow.pop %v1566
    %v1568 = vmul.f32 %v1563, 1.442695
    %v1569 = vpow.pop %v1568
    %v1570 = vmul.f32 %v1564, 1.442695
    %v1571 = vpow.pop %v1570
    %v1572 = vmul.f32 %v1565, 1.442695
    %v1573 = vpow.pop %v1572
    %1578 = vrot.lane.b32.xlu0 %v1438, 96
    %v1579 = vpop.permute.xlu0 %1578
    %1580 = vrot.lane.b32.xlu0 %v1441, 96
    %v1581 = vpop.permute.xlu0 %1580
    %1582 = vrot.lane.b32.xlu0 %v1444, 96
    %v1583 = vpop.permute.xlu0 %1582
    %1584 = vrot.lane.b32.xlu0 %v1445, 96
    %v1585 = vpop.permute.xlu0 %1584
    %v1590 = vmul.f32 %v1567, %v1579
    %v1591 = vmul.f32 %v1569, %v1581
    %v1592 = vmul.f32 %v1571, %v1583
    %v1593 = vmul.f32 %v1573, %v1585
    %v1594 = vmul.f32 %v1567, %v1438
    %v1595 = vmul.f32 %v1569, %v1441
    %v1596 = vmul.f32 %v1571, %v1444
    %v1597 = vmul.f32 %v1573, %v1445
    %v1598 = vsel %vm303, %v1590, %v1594
    %v1599 = vsel %vm303, %v1591, %v1595
    %v1600 = vsel %vm303, %v1592, %v1596
    %v1601 = vsel %vm303, %v1593, %v1597
    %vm1602 = vcmask 228352
    %v1604 = vsel %vm1602, %v1446, 0
    %v1607 = vsel %vm1436, %v1573, 0
    %1609 = vmatpush.msra.mxu0 0.0
    %1610 = vmatpush.msra.mxu0 0.0
    %1611 = vmatpush.msra.mxu0 0.0
    %1612 = vmatpush.msra.mxu0 0.0
    %1613 = vmatpush.msra.mxu0 0.0
    %1614 = vmatpush.msra.mxu0 0.0
    %1615 = vmatpush.msra.mxu0 0.0
    %1616 = vmatpush.msra.mxu0 0.0
    %1617 = vmatpush.msra.mxu0 0.0
    %1618 = vmatpush.msra.mxu0 0.0
    %1619 = vmatpush.msra.mxu0 0.0
    %1620 = vmatpush.msra.mxu0 0.0
    %1621 = vmatpush.msra.mxu0 %v1607
    %1622 = vmatpush.msra.mxu0 %v1571
    %1623 = vmatpush.msra.mxu0 %v1569
    %1624 = vmatpush.msra.mxu0 %v1567
    %1625 = vmatmul.f32.gmra.mxu0 %v1604
    %v1626 = vpop.f32.mrf.mxu0
    %v1627 = vadd.f32 0.0, %v1626
    %1628 = vdwg.mxu0
    %v1630 = vsel %vm1436, %v1601, 0
    %1632 = vmatpush.msra.mxu0 0.0
    %1633 = vmatpush.msra.mxu0 0.0
    %1634 = vmatpush.msra.mxu0 0.0
    %1635 = vmatpush.msra.mxu0 0.0
    %1636 = vmatpush.msra.mxu0 0.0
    %1637 = vmatpush.msra.mxu0 0.0
    %1638 = vmatpush.msra.mxu0 0.0
    %1639 = vmatpush.msra.mxu0 0.0
    %1640 = vmatpush.msra.mxu0 0.0
    %1641 = vmatpush.msra.mxu0 0.0
    %1642 = vmatpush.msra.mxu0 0.0
    %1643 = vmatpush.msra.mxu0 0.0
    %1644 = vmatpush.msra.mxu0 %v1630
    %1645 = vmatpush.msra.mxu0 %v1600
    %1646 = vmatpush.msra.mxu0 %v1599
    %1647 = vmatpush.msra.mxu0 %v1598
    %1648 = vmatmul.f32.gmra.mxu0 %v1604
    %v1649 = vpop.f32.mrf.mxu0
    %v1650 = vadd.f32 0.0, %v1649
    %1651 = vdwg.mxu0
    %v1652 = vrcp.pop %v1627
    %v1653 = vmul.f32 %v1627, %v1652
    %v1654 = vsub.f32 1.0, %v1653
    %v1655 = vmul.f32 %v1652, %v1654
    %v1656 = vadd.f32 %v1652, %v1655
    %vm1657 = vweird.f32 %v1627
    %vm1658 = vweird.f32 %v1652
    %vm1659 = vmor %vm1657, %vm1658
    %v1660 = vsel %vm1659, %v1652, %v1656
    %v1661 = vand.u32 2147483647, %v1627
    %vm1662 = vcmp.eq.f32.partialorder %v1661, 8.507059e+37
    %v1663 = vand.u32 %v1627, 2147483648
    %v1664 = vor.u32 1.1754944e-38, %v1663
    %v1665 = vsel %vm1662, %v1664, %v1660
    %v1666 = vmul.f32 %v1650, %v1665
    %v1667 = vmul.f32 %v1666, %v1666
    %vm1668 = vcmask 517120
    %v1669 = vsel %vm1668, %v1667, 0.0
    %1670 = vadd.xlane.f32.xlu0 %v1669
    %v1671 = vpop.xlane.xlu0 %1670
    %v1672 = vrsqrt.pop %v1671
    %v1673 = vmul.f32 %v1672, %v1671
    %v1674 = vmul.f32 %v1673, %v1672
    %v1675 = vmul.f32 0.5, %v1674
    %v1676 = vsub.f32 1.5, %v1675
    %v1677 = vmul.f32 %v1672, %v1676
    %v1678 = vmul.f32 %v1671, %v1677
    %vm1679 = vcmp.eq.f32.partialorder %v1671, inf
    %v1680 = vsel %vm1679, %v1671, %v1678
    %vm1681 = vcmp.eq.f32.partialorder %v1671, 0.0
    %v1682 = vand.u32 %v1671, 2147483648
    %v1683 = vsel %vm1681, %v1682, %v1680
    %v1684 = vmax.f32 %v1683, 1e-12
    %v1685 = vrcp.pop %v1684
    %v1686 = vmul.f32 %v1684, %v1685
    %v1687 = vsub.f32 1.0, %v1686
    %v1688 = vmul.f32 %v1685, %v1687
    %v1689 = vadd.f32 %v1685, %v1688
    %vm1690 = vweird.f32 %v1684
    %vm1691 = vweird.f32 %v1685
    %vm1692 = vmor %vm1690, %vm1691
    %v1693 = vsel %vm1692, %v1685, %v1689
    %v1694 = vand.u32 2147483647, %v1684
    %vm1695 = vcmp.eq.f32.partialorder %v1694, 8.507059e+37
    %v1696 = vand.u32 %v1684, 2147483648
    %v1697 = vor.u32 1.1754944e-38, %v1696
    %v1698 = vsel %vm1695, %v1697, %v1693
    %v1699 = vmul.f32 %v1666, %v1698
    %v1700 = vsel %vm1547, %v1699, 0.0
    %1701 = vst [vmem:[#allocation2] sm:$0x3] %v1700
    // Predicated region
    $region14: #{cnn_rnn_encoder_forward.1} parent=1 // pred_check
      _
    $region15: #{cnn_rnn_encoder_forward.1} parent=1 // pred_check_branch
      %1703 = sbr.rel (0) target = $region17
    $region16: #{cnn_rnn_encoder_forward.1} parent=1 // pred_region
      %1705 = vsyncadd [#allocation3], 0
      %s1707 = sshll.u32 [#allocation2], 4
      %s1708 = int_to_ptr.vmem [resolvable:$true] %s1707
      %s1709 = sshll.u32 %s3, 4
      %s1710 = int_to_ptr.hbm [resolvable:$true] %s1709
      %1712 = dma.vmem_to_hbm [thread:$0]  %s1708, 32, %s1710, [#allocation3]
    $region17: #{cnn_rnn_encoder_forward.1} parent=1 // pred_fallthru
      _
    // Predicated region
    $region18: #{cnn_rnn_encoder_forward.1} parent=1 // pred_check
      _
    $region19: #{cnn_rnn_encoder_forward.1} parent=1 // pred_check_branch
      %1714 = sbr.rel (0) target = $region21
    $region20: #{cnn_rnn_encoder_forward.1} parent=1 // pred_region
      %1716 = dma.done [#allocation3], 32
    $region21: #{cnn_rnn_encoder_forward.1} parent=1 // pred_fallthru
      _
    %1717 = vsyncpa [#allocation3], 1

</llo_original>
